<compile_context>
chip_gen: v7x
topology: tpu7x:2x2x1
jax: 0.10.0
libtpu: 0.0.40
codegen_flags: <defaults>
</compile_context>

<pallas_src>
import functools

import jax
import jax.numpy as jnp
from jax.experimental import pallas as pl
from jax.experimental.pallas import tpu as pltpu

INPUT_DIM = 50
HIDDEN_DIM = 50


def _lstm_seq_kernel(len_ref, x_ref, wih_ref, whh_ref, b_ref, out_ref, xproj_ref,
                     *, seq_len, batch_blk, input_p, hidden_p, gate_p):
    """Whole-sequence LSTM recurrence for one batch block.

    len_ref  : (BB, 1)        int32  valid lengths per batch row
    x_ref    : (T, BB, Ip)    f32    padded inputs (time-major)
    wih_ref  : (Ip, 4*Gp)     f32    W_ih^T, gates packed (i,f,o,g), 128 lanes/gate
    whh_ref  : (Hp, 4*Gp)     f32    W_hh^T, same packing
    b_ref    : (1, 4*Gp)      f32    b_ih + b_hh, same packing
    out_ref  : (BB, Hp)       f32    last-valid hidden state per batch row
    xproj_ref: (T*BB, 4*Gp)   f32    VMEM scratch for the hoisted input projection
    """
    T, BB, GP, HP = seq_len, batch_blk, gate_p, hidden_p

    # ---- Prologue (off the serial path): project ALL timesteps at once. ----
    # (T, BB, Ip) -> (T*BB, Ip) is relayout-free (BB is a multiple of 8).
    x2d = x_ref[...].reshape(T * BB, input_p)
    xproj_ref[...] = (
        jnp.dot(x2d, wih_ref[...], preferred_element_type=jnp.float32)
        + b_ref[...]
    )

    # Last valid timestep index, broadcast ONCE to a full (BB, Hp) tile.
    # Padded batch rows have length 0 -> len_m1 = -1 never matches t.
    len_m1 = jnp.broadcast_to(len_ref[...], (BB, HP)) - 1      # int32

    def step(t, carry):
        h_prev, c_prev, out_acc = carry                        # each (BB, Hp)
        row = pl.multiple_of(t * BB, BB)                       # sublane-aligned
        gx = xproj_ref[pl.ds(row, BB), :]                      # (BB, 4*Gp)
        # TODO(synk): replace with matmul_push_rhs/acc_lhs so the (Hp, 4*Gp)
        # weight tile is not re-streamed into the MXU every step.
        gates = gx + jnp.dot(h_prev, whh_ref[...],
                             preferred_element_type=jnp.float32)
        # Packed gate order (i, f, o, g): one fused sigmoid over 3 contiguous
        # vreg tiles, one tanh over the last tile.
        sig = jax.nn.sigmoid(gates[:, 0:3 * GP])
        i_g = sig[:, 0 * GP:1 * GP]
        f_g = sig[:, 1 * GP:2 * GP]
        o_g = sig[:, 2 * GP:3 * GP]
        g_g = jnp.tanh(gates[:, 3 * GP:4 * GP])
        c_new = f_g * c_prev + i_g * g_g
        h_new = o_g * jnp.tanh(c_new)
        # Keep h exactly at the last valid step of each batch row.
        out_acc = jnp.where(len_m1 == t, h_new, out_acc)
        return h_new, c_new, out_acc

    zeros = jnp.zeros((BB, HP), jnp.float32)
    # Full unroll for short sequences; partial unroll keeps code size bounded
    # while still giving the LLO scheduler cross-iteration visibility.
    unroll = True if T <= 64 else 8
    _, _, out = jax.lax.fori_loop(0, T, step, (zeros, zeros, zeros),
                                  unroll=unroll)
    out_ref[...] = out


def _pick_batch_block(batch_padded):
    """Batch rows per kernel invocation.

    Split across a "parallel" grid axis only on v7x (2 TensorCores/chip) and
    only when there are enough rows; on v5e/v6e a batch grid is just a serial
    loop that multiplies the latency-bound recurrence.
    """
    try:
        kind = jax.devices()[0].device_kind.lower()
    except Exception:  # pragma: no cover
        kind = ""
    if "v7" in kind and batch_padded >= 16:
        half = batch_padded // 2
        if half % 8 == 0:
            return half
        return 8
    return batch_padded


def sequence_forward(x_padded, lengths, w_ih, w_hh, b_ih, b_hh):
    """x_padded: (T, B, I) f32 (time-major), lengths: (B,) int -> (B, H) f32.

    Semantics: lengths[i] must satisfy 1 <= lengths[i] <= T (as with
    pad_packed_sequence); rows violating this return zeros from the kernel.
    """
    T, B, I = x_padded.shape
    H = w_hh.shape[1]
    f32 = jnp.float32

    # Native-tile padding: 8 sublanes for batch, 128 lanes for features/hidden,
    # and 128 lanes per gate so gate slices are whole vreg tiles.
    Bp = ((B + 7) // 8) * 8
    Ip = ((I + 127) // 128) * 128
    Hp = ((H + 127) // 128) * 128
    GP = Hp                                   # per-gate padded lane width

    BB = _pick_batch_block(Bp)                # batch rows per grid block
    n_blocks = Bp // BB

    # Pad inputs (time-major, zero fill).
    x_pad = jnp.zeros((T, Bp, Ip), f32).at[:, :B, :I].set(x_padded.astype(f32))

    # Repack weights/bias: gate order (i, f, o, g), each gate padded to GP
    # lanes (zeros elsewhere).  Zero padding keeps padded h/c lanes exactly 0.
    wih_t = w_ih.astype(f32).T                # (I, 4H), PyTorch order i,f,g,o
    whh_t = w_hh.astype(f32).T                # (H, 4H)
    bias = (b_ih + b_hh).astype(f32)          # (4H,)
    wih_pad = jnp.zeros((Ip, 4 * GP), f32)
    whh_pad = jnp.zeros((Hp, 4 * GP), f32)
    bias_pad = jnp.zeros((1, 4 * GP), f32)
    gate_src = (0, 1, 3, 2)                   # (i, f, o, g) <- (i, f, g, o)
    for dst, src in enumerate(gate_src):
        wih_pad = wih_pad.at[:I, dst * GP:dst * GP + H].set(
            wih_t[:, src * H:(src + 1) * H])
        whh_pad = whh_pad.at[:H, dst * GP:dst * GP + H].set(
            whh_t[:, src * H:(src + 1) * H])
        bias_pad = bias_pad.at[0, dst * GP:dst * GP + H].set(
            bias[src * H:(src + 1) * H])

    # Thin lengths tile: padded rows get length 0 so they never match a step.
    len_pad = jnp.zeros((Bp, 1), jnp.int32).at[:B, 0].set(lengths.astype(jnp.int32))

    kernel = functools.partial(_lstm_seq_kernel, seq_len=T, batch_blk=BB,
                               input_p=Ip, hidden_p=Hp, gate_p=GP)

    out_padded = pl.pallas_call(
        kernel,
        out_shape=jax.ShapeDtypeStruct((Bp, Hp), f32),
        grid_spec=pltpu.PrefetchScalarGridSpec(
            num_scalar_prefetch=0,
            grid=(n_blocks,),
            in_specs=[
                pl.BlockSpec((BB, 1), lambda b: (b, 0)),          # lengths
                pl.BlockSpec((T, BB, Ip), lambda b: (0, b, 0)),   # x
                pl.BlockSpec((Ip, 4 * GP), lambda b: (0, 0)),     # W_ih^T
                pl.BlockSpec((Hp, 4 * GP), lambda b: (0, 0)),     # W_hh^T
                pl.BlockSpec((1, 4 * GP), lambda b: (0, 0)),      # bias
            ],
            out_specs=pl.BlockSpec((BB, Hp), lambda b: (b, 0)),
            scratch_shapes=[pltpu.VMEM((T * BB, 4 * GP), jnp.float32)],
        ),
        compiler_params=pltpu.CompilerParams(
            dimension_semantics=("parallel",),
            # Raise the scoped-VMEM default (16/32 MiB) so larger T/B still
            # fit; 48 MiB keeps headroom under v7x's 64 MiB physical VMEM.
            vmem_limit_bytes=48 * 1024 * 1024,
        ),
    )(len_pad, x_pad, wih_pad, whh_pad, bias_pad)

    return out_padded[:B, :H]


def _reference_forward(x_padded, lengths, w_ih, w_hh, b_ih, b_hh):
    """Pure-JAX reference (PyTorch LSTM semantics, gate order i,f,g,o)."""
    T, B, I = x_padded.shape
    H = w_hh.shape[1]

    def step(carry, x_t):
        h, c = carry
        gates = x_t @ w_ih.T + h @ w_hh.T + b_ih + b_hh
        i_g, f_g, g_g, o_g = jnp.split(gates, 4, axis=-1)
        i_g = jax.nn.sigmoid(i_g)
        f_g = jax.nn.sigmoid(f_g)
        g_g = jnp.tanh(g_g)
        o_g = jax.nn.sigmoid(o_g)
        c = f_g * c + i_g * g_g
        h = o_g * jnp.tanh(c)
        return (h, c), h

    init = (jnp.zeros((B, H), jnp.float32), jnp.zeros((B, H), jnp.float32))
    _, outs = jax.lax.scan(step, init, x_padded)   # (T, B, H)
    return outs[lengths - 1, jnp.arange(B)]


if __name__ == "__main__":
    key = jax.random.PRNGKey(0)
    k_x, k_wih, k_whh, k_bih, k_bhh = jax.random.split(key, 5)

    T, B = 8, 3
    I, H = INPUT_DIM, HIDDEN_DIM

    # Deterministic synthetic parameters (PyTorch init scale U(-1/sqrt(H), 1/sqrt(H))).
    scale = 1.0 / jnp.sqrt(jnp.float32(H))
    w_ih = jax.random.uniform(k_wih, (4 * H, I), jnp.float32, -scale, scale)
    w_hh = jax.random.uniform(k_whh, (4 * H, H), jnp.float32, -scale, scale)
    b_ih = jax.random.uniform(k_bih, (4 * H,), jnp.float32, -scale, scale)
    b_hh = jax.random.uniform(k_bhh, (4 * H,), jnp.float32, -scale, scale)

    # Padded sequence batch (time-major) with per-example valid lengths,
    # emulating the PackedSequence input of the PyTorch module.
    x = jax.random.normal(k_x, (T, B, I), jnp.float32)
    lengths = jnp.array([8, 5, 3], dtype=jnp.int32)
    t_idx = jnp.arange(T)[:, None, None]
    x = jnp.where(t_idx < lengths[None, :, None], x, 0.0)

    out = sequence_forward(x, lengths, w_ih, w_hh, b_ih, b_hh)
    out = jax.block_until_ready(out)

    ref = _reference_forward(x, lengths, w_ih, w_hh, b_ih, b_hh)
    assert out.shape == (B, H)
    assert jnp.allclose(out, ref, rtol=1e-4, atol=1e-5), "mismatch vs JAX reference"

    print("KERNEL_OK")
</pallas_src>

<mosaic_0001>
module attributes {stable_mosaic.version = 11 : i64} {
  func.func @_lstm_seq_kernel(%arg0: i32, %arg1: memref<8x1xi32, #tpu.memory_space<vmem>>, %arg2: memref<8x8x128xf32, #tpu.memory_space<vmem>>, %arg3: memref<128x512xf32, #tpu.memory_space<vmem>>, %arg4: memref<128x512xf32, #tpu.memory_space<vmem>>, %arg5: memref<1x512xf32, #tpu.memory_space<vmem>>, %arg6: memref<8x128xf32, #tpu.memory_space<vmem>>, %arg7: memref<64x512xf32, #tpu.memory_space<vmem>>) attributes {dimension_semantics = [#tpu.dimension_semantics<parallel>], iteration_bounds = array<i64: 1>, scalar_prefetch = 0 : i64, scratch_operands = 1 : i64, tpu.core_type = #tpu.core_type<tc>, window_params = [{transform_indices = @transform_0, window_bounds = array<i64: 8, 1>}, {transform_indices = @transform_1, window_bounds = array<i64: 8, 8, 128>}, {pipeline_mode = #tpu.pipeline_mode<synchronous>, transform_indices = @transform_2, window_bounds = array<i64: 128, 512>}, {pipeline_mode = #tpu.pipeline_mode<synchronous>, transform_indices = @transform_3, window_bounds = array<i64: 128, 512>}, {pipeline_mode = #tpu.pipeline_mode<synchronous>, transform_indices = @transform_4, window_bounds = array<i64: 1, 512>}, {transform_indices = @transform_5, window_bounds = array<i64: 8, 128>}]} {
    %c0 = arith.constant 0 : index
    %c0_0 = arith.constant 0 : index
    %c0_1 = arith.constant 0 : index
    %0 = vector.load %arg2[%c0, %c0_0, %c0_1] : memref<8x8x128xf32, #tpu.memory_space<vmem>>, vector<8x8x128xf32>
    %1 = vector.shape_cast %0 : vector<8x8x128xf32> to vector<64x128xf32>
    %c0_2 = arith.constant 0 : index
    %c0_3 = arith.constant 0 : index
    %2 = vector.load %arg3[%c0_2, %c0_3] : memref<128x512xf32, #tpu.memory_space<vmem>>, vector<128x512xf32>
    %cst = arith.constant dense<0.000000e+00> : vector<64x512xf32>
    %3 = tpu.matmul %1, %2, %cst {dimension_numbers = #tpu.dot_dimension_numbers<[1], [0], [0], [1], [0, 0, 1, 1], [], []>} : vector<64x128xf32>, vector<128x512xf32>, vector<64x512xf32> -> vector<64x512xf32>
    %c0_4 = arith.constant 0 : index
    %c0_5 = arith.constant 0 : index
    %4 = vector.load %arg5[%c0_4, %c0_5] : memref<1x512xf32, #tpu.memory_space<vmem>>, vector<1x512xf32>
    %5 = vector.broadcast %4 : vector<1x512xf32> to vector<64x512xf32>
    %6 = arith.addf %3, %5 : vector<64x512xf32>
    %c0_6 = arith.constant 0 : index
    %c0_7 = arith.constant 0 : index
    %7 = vector.load %arg7[%c0_6, %c0_7] : memref<64x512xf32, #tpu.memory_space<vmem>>, vector<64x512xf32>
    tpu.vector_store %arg7[%c0_6, %c0_7], %6 {strides = array<i32>} : memref<64x512xf32, #tpu.memory_space<vmem>>, vector<64x512xf32>,
    %c0_8 = arith.constant 0 : index
    %c0_9 = arith.constant 0 : index
    %8 = vector.load %arg1[%c0_8, %c0_9] : memref<8x1xi32, #tpu.memory_space<vmem>>, vector<8x1xi32>
    %9 = vector.shape_cast %8 : vector<8x1xi32> to vector<8x1xi32>
    %10 = vector.broadcast %9 : vector<8x1xi32> to vector<8x128xi32>
    %c1_i32 = arith.constant 1 : i32
    %11 = vector.broadcast %c1_i32 : i32 to vector<8x128xi32>
    %12 = arith.subi %10, %11 : vector<8x128xi32>
    %cst_10 = arith.constant 0.000000e+00 : f32
    %13 = vector.broadcast %cst_10 : f32 to vector<8x128xf32>
    %c0_i32 = arith.constant 0 : i32
    %c8_i32 = arith.constant 8 : i32
    %14 = arith.muli %c0_i32, %c8_i32 : i32
    %15 = tpu.assume_multiple %14, 8 : i32
    %16 = arith.index_cast %15 : i32 to index
    %c0_11 = arith.constant 0 : index
    %17 = vector.load %arg7[%16, %c0_11] : memref<64x512xf32, #tpu.memory_space<vmem>>, vector<8x512xf32>
    %c0_12 = arith.constant 0 : index
    %c0_13 = arith.constant 0 : index
    %18 = vector.load %arg4[%c0_12, %c0_13] : memref<128x512xf32, #tpu.memory_space<vmem>>, vector<128x512xf32>
    %cst_14 = arith.constant dense<0.000000e+00> : vector<8x512xf32>
    %19 = tpu.matmul %13, %18, %cst_14 {dimension_numbers = #tpu.dot_dimension_numbers<[1], [0], [0], [1], [0, 0, 1, 1], [], []>} : vector<8x128xf32>, vector<128x512xf32>, vector<8x512xf32> -> vector<8x512xf32>
    %20 = arith.addf %17, %19 : vector<8x512xf32>
    %21 = vector.extract_strided_slice %20 {offsets = [0, 0], sizes = [8, 384], strides = [1, 1]} : vector<8x512xf32> to vector<8x384xf32>
    %22 = arith.negf %21 : vector<8x384xf32>
    %23 = math.exp %22 : vector<8x384xf32>
    %cst_15 = arith.constant 1.000000e+00 : f32
    %24 = vector.broadcast %cst_15 : f32 to vector<8x384xf32>
    %25 = arith.addf %24, %23 : vector<8x384xf32>
    %26 = arith.divf %24, %25 : vector<8x384xf32>
    %27 = vector.extract_strided_slice %26 {offsets = [0, 0], sizes = [8, 128], strides = [1, 1]} : vector<8x384xf32> to vector<8x128xf32>
    %28 = vector.extract_strided_slice %26 {offsets = [0, 128], sizes = [8, 128], strides = [1, 1]} : vector<8x384xf32> to vector<8x128xf32>
    %29 = vector.extract_strided_slice %26 {offsets = [0, 256], sizes = [8, 128], strides = [1, 1]} : vector<8x384xf32> to vector<8x128xf32>
    %30 = vector.extract_strided_slice %20 {offsets = [0, 384], sizes = [8, 128], strides = [1, 1]} : vector<8x512xf32> to vector<8x128xf32>
    %31 = math.tanh %30 : vector<8x128xf32>
    %32 = arith.mulf %28, %13 : vector<8x128xf32>
    %33 = arith.mulf %27, %31 : vector<8x128xf32>
    %34 = arith.addf %32, %33 : vector<8x128xf32>
    %35 = math.tanh %34 : vector<8x128xf32>
    %36 = arith.mulf %29, %35 : vector<8x128xf32>
    %37 = vector.broadcast %c0_i32 : i32 to vector<8x128xi32>
    %38 = arith.cmpi eq, %12, %37 : vector<8x128xi32>
    %39 = arith.select %38, %36, %13 : vector<8x128xi1>, vector<8x128xf32>
    %c1_i32_16 = arith.constant 1 : i32
    %c8_i32_17 = arith.constant 8 : i32
    %40 = arith.muli %c1_i32_16, %c8_i32_17 : i32
    %41 = tpu.assume_multiple %40, 8 : i32
    %42 = arith.index_cast %41 : i32 to index
    %c0_18 = arith.constant 0 : index
    %43 = vector.load %arg7[%42, %c0_18] : memref<64x512xf32, #tpu.memory_space<vmem>>, vector<8x512xf32>
    %c0_19 = arith.constant 0 : index
    %c0_20 = arith.constant 0 : index
    %44 = vector.load %arg4[%c0_19, %c0_20] : memref<128x512xf32, #tpu.memory_space<vmem>>, vector<128x512xf32>
    %cst_21 = arith.constant dense<0.000000e+00> : vector<8x512xf32>
    %45 = tpu.matmul %36, %44, %cst_21 {dimension_numbers = #tpu.dot_dimension_numbers<[1], [0], [0], [1], [0, 0, 1, 1], [], []>} : vector<8x128xf32>, vector<128x512xf32>, vector<8x512xf32> -> vector<8x512xf32>
    %46 = arith.addf %43, %45 : vector<8x512xf32>
    %47 = vector.extract_strided_slice %46 {offsets = [0, 0], sizes = [8, 384], strides = [1, 1]} : vector<8x512xf32> to vector<8x384xf32>
    %48 = arith.negf %47 : vector<8x384xf32>
    %49 = math.exp %48 : vector<8x384xf32>
    %cst_22 = arith.constant 1.000000e+00 : f32
    %50 = vector.broadcast %cst_22 : f32 to vector<8x384xf32>
    %51 = arith.addf %50, %49 : vector<8x384xf32>
    %52 = arith.divf %50, %51 : vector<8x384xf32>
    %53 = vector.extract_strided_slice %52 {offsets = [0, 0], sizes = [8, 128], strides = [1, 1]} : vector<8x384xf32> to vector<8x128xf32>
    %54 = vector.extract_strided_slice %52 {offsets = [0, 128], sizes = [8, 128], strides = [1, 1]} : vector<8x384xf32> to vector<8x128xf32>
    %55 = vector.extract_strided_slice %52 {offsets = [0, 256], sizes = [8, 128], strides = [1, 1]} : vector<8x384xf32> to vector<8x128xf32>
    %56 = vector.extract_strided_slice %46 {offsets = [0, 384], sizes = [8, 128], strides = [1, 1]} : vector<8x512xf32> to vector<8x128xf32>
    %57 = math.tanh %56 : vector<8x128xf32>
    %58 = arith.mulf %54, %34 : vector<8x128xf32>
    %59 = arith.mulf %53, %57 : vector<8x128xf32>
    %60 = arith.addf %58, %59 : vector<8x128xf32>
    %61 = math.tanh %60 : vector<8x128xf32>
    %62 = arith.mulf %55, %61 : vector<8x128xf32>
    %63 = vector.broadcast %c1_i32_16 : i32 to vector<8x128xi32>
    %64 = arith.cmpi eq, %12, %63 : vector<8x128xi32>
    %65 = arith.select %64, %62, %39 : vector<8x128xi1>, vector<8x128xf32>
    %c2_i32 = arith.constant 2 : i32
    %c8_i32_23 = arith.constant 8 : i32
    %66 = arith.muli %c2_i32, %c8_i32_23 : i32
    %67 = tpu.assume_multiple %66, 8 : i32
    %68 = arith.index_cast %67 : i32 to index
    %c0_24 = arith.constant 0 : index
    %69 = vector.load %arg7[%68, %c0_24] : memref<64x512xf32, #tpu.memory_space<vmem>>, vector<8x512xf32>
    %c0_25 = arith.constant 0 : index
    %c0_26 = arith.constant 0 : index
    %70 = vector.load %arg4[%c0_25, %c0_26] : memref<128x512xf32, #tpu.memory_space<vmem>>, vector<128x512xf32>
    %cst_27 = arith.constant dense<0.000000e+00> : vector<8x512xf32>
    %71 = tpu.matmul %62, %70, %cst_27 {dimension_numbers = #tpu.dot_dimension_numbers<[1], [0], [0], [1], [0, 0, 1, 1], [], []>} : vector<8x128xf32>, vector<128x512xf32>, vector<8x512xf32> -> vector<8x512xf32>
    %72 = arith.addf %69, %71 : vector<8x512xf32>
    %73 = vector.extract_strided_slice %72 {offsets = [0, 0], sizes = [8, 384], strides = [1, 1]} : vector<8x512xf32> to vector<8x384xf32>
    %74 = arith.negf %73 : vector<8x384xf32>
    %75 = math.exp %74 : vector<8x384xf32>
    %cst_28 = arith.constant 1.000000e+00 : f32
    %76 = vector.broadcast %cst_28 : f32 to vector<8x384xf32>
    %77 = arith.addf %76, %75 : vector<8x384xf32>
    %78 = arith.divf %76, %77 : vector<8x384xf32>
    %79 = vector.extract_strided_slice %78 {offsets = [0, 0], sizes = [8, 128], strides = [1, 1]} : vector<8x384xf32> to vector<8x128xf32>
    %80 = vector.extract_strided_slice %78 {offsets = [0, 128], sizes = [8, 128], strides = [1, 1]} : vector<8x384xf32> to vector<8x128xf32>
    %81 = vector.extract_strided_slice %78 {offsets = [0, 256], sizes = [8, 128], strides = [1, 1]} : vector<8x384xf32> to vector<8x128xf32>
    %82 = vector.extract_strided_slice %72 {offsets = [0, 384], sizes = [8, 128], strides = [1, 1]} : vector<8x512xf32> to vector<8x128xf32>
    %83 = math.tanh %82 : vector<8x128xf32>
    %84 = arith.mulf %80, %60 : vector<8x128xf32>
    %85 = arith.mulf %79, %83 : vector<8x128xf32>
    %86 = arith.addf %84, %85 : vector<8x128xf32>
    %87 = math.tanh %86 : vector<8x128xf32>
    %88 = arith.mulf %81, %87 : vector<8x128xf32>
    %89 = vector.broadcast %c2_i32 : i32 to vector<8x128xi32>
    %90 = arith.cmpi eq, %12, %89 : vector<8x128xi32>
    %91 = arith.select %90, %88, %65 : vector<8x128xi1>, vector<8x128xf32>
    %c3_i32 = arith.constant 3 : i32
    %c8_i32_29 = arith.constant 8 : i32
    %92 = arith.muli %c3_i32, %c8_i32_29 : i32
    %93 = tpu.assume_multiple %92, 8 : i32
    %94 = arith.index_cast %93 : i32 to index
    %c0_30 = arith.constant 0 : index
    %95 = vector.load %arg7[%94, %c0_30] : memref<64x512xf32, #tpu.memory_space<vmem>>, vector<8x512xf32>
    %c0_31 = arith.constant 0 : index
    %c0_32 = arith.constant 0 : index
    %96 = vector.load %arg4[%c0_31, %c0_32] : memref<128x512xf32, #tpu.memory_space<vmem>>, vector<128x512xf32>
    %cst_33 = arith.constant dense<0.000000e+00> : vector<8x512xf32>
    %97 = tpu.matmul %88, %96, %cst_33 {dimension_numbers = #tpu.dot_dimension_numbers<[1], [0], [0], [1], [0, 0, 1, 1], [], []>} : vector<8x128xf32>, vector<128x512xf32>, vector<8x512xf32> -> vector<8x512xf32>
    %98 = arith.addf %95, %97 : vector<8x512xf32>
    %99 = vector.extract_strided_slice %98 {offsets = [0, 0], sizes = [8, 384], strides = [1, 1]} : vector<8x512xf32> to vector<8x384xf32>
    %100 = arith.negf %99 : vector<8x384xf32>
    %101 = math.exp %100 : vector<8x384xf32>
    %cst_34 = arith.constant 1.000000e+00 : f32
    %102 = vector.broadcast %cst_34 : f32 to vector<8x384xf32>
    %103 = arith.addf %102, %101 : vector<8x384xf32>
    %104 = arith.divf %102, %103 : vector<8x384xf32>
    %105 = vector.extract_strided_slice %104 {offsets = [0, 0], sizes = [8, 128], strides = [1, 1]} : vector<8x384xf32> to vector<8x128xf32>
    %106 = vector.extract_strided_slice %104 {offsets = [0, 128], sizes = [8, 128], strides = [1, 1]} : vector<8x384xf32> to vector<8x128xf32>
    %107 = vector.extract_strided_slice %104 {offsets = [0, 256], sizes = [8, 128], strides = [1, 1]} : vector<8x384xf32> to vector<8x128xf32>
    %108 = vector.extract_strided_slice %98 {offsets = [0, 384], sizes = [8, 128], strides = [1, 1]} : vector<8x512xf32> to vector<8x128xf32>
    %109 = math.tanh %108 : vector<8x128xf32>
    %110 = arith.mulf %106, %86 : vector<8x128xf32>
    %111 = arith.mulf %105, %109 : vector<8x128xf32>
    %112 = arith.addf %110, %111 : vector<8x128xf32>
    %113 = math.tanh %112 : vector<8x128xf32>
    %114 = arith.mulf %107, %113 : vector<8x128xf32>
    %115 = vector.broadcast %c3_i32 : i32 to vector<8x128xi32>
    %116 = arith.cmpi eq, %12, %115 : vector<8x128xi32>
    %117 = arith.select %116, %114, %91 : vector<8x128xi1>, vector<8x128xf32>
    %c4_i32 = arith.constant 4 : i32
    %c8_i32_35 = arith.constant 8 : i32
    %118 = arith.muli %c4_i32, %c8_i32_35 : i32
    %119 = tpu.assume_multiple %118, 8 : i32
    %120 = arith.index_cast %119 : i32 to index
    %c0_36 = arith.constant 0 : index
    %121 = vector.load %arg7[%120, %c0_36] : memref<64x512xf32, #tpu.memory_space<vmem>>, vector<8x512xf32>
    %c0_37 = arith.constant 0 : index
    %c0_38 = arith.constant 0 : index
    %122 = vector.load %arg4[%c0_37, %c0_38] : memref<128x512xf32, #tpu.memory_space<vmem>>, vector<128x512xf32>
    %cst_39 = arith.constant dense<0.000000e+00> : vector<8x512xf32>
    %123 = tpu.matmul %114, %122, %cst_39 {dimension_numbers = #tpu.dot_dimension_numbers<[1], [0], [0], [1], [0, 0, 1, 1], [], []>} : vector<8x128xf32>, vector<128x512xf32>, vector<8x512xf32> -> vector<8x512xf32>
    %124 = arith.addf %121, %123 : vector<8x512xf32>
    %125 = vector.extract_strided_slice %124 {offsets = [0, 0], sizes = [8, 384], strides = [1, 1]} : vector<8x512xf32> to vector<8x384xf32>
    %126 = arith.negf %125 : vector<8x384xf32>
    %127 = math.exp %126 : vector<8x384xf32>
    %cst_40 = arith.constant 1.000000e+00 : f32
    %128 = vector.broadcast %cst_40 : f32 to vector<8x384xf32>
    %129 = arith.addf %128, %127 : vector<8x384xf32>
    %130 = arith.divf %128, %129 : vector<8x384xf32>
    %131 = vector.extract_strided_slice %130 {offsets = [0, 0], sizes = [8, 128], strides = [1, 1]} : vector<8x384xf32> to vector<8x128xf32>
    %132 = vector.extract_strided_slice %130 {offsets = [0, 128], sizes = [8, 128], strides = [1, 1]} : vector<8x384xf32> to vector<8x128xf32>
    %133 = vector.extract_strided_slice %130 {offsets = [0, 256], sizes = [8, 128], strides = [1, 1]} : vector<8x384xf32> to vector<8x128xf32>
    %134 = vector.extract_strided_slice %124 {offsets = [0, 384], sizes = [8, 128], strides = [1, 1]} : vector<8x512xf32> to vector<8x128xf32>
    %135 = math.tanh %134 : vector<8x128xf32>
    %136 = arith.mulf %132, %112 : vector<8x128xf32>
    %137 = arith.mulf %131, %135 : vector<8x128xf32>
    %138 = arith.addf %136, %137 : vector<8x128xf32>
    %139 = math.tanh %138 : vector<8x128xf32>
    %140 = arith.mulf %133, %139 : vector<8x128xf32>
    %141 = vector.broadcast %c4_i32 : i32 to vector<8x128xi32>
    %142 = arith.cmpi eq, %12, %141 : vector<8x128xi32>
    %143 = arith.select %142, %140, %117 : vector<8x128xi1>, vector<8x128xf32>
    %c5_i32 = arith.constant 5 : i32
    %c8_i32_41 = arith.constant 8 : i32
    %144 = arith.muli %c5_i32, %c8_i32_41 : i32
    %145 = tpu.assume_multiple %144, 8 : i32
    %146 = arith.index_cast %145 : i32 to index
    %c0_42 = arith.constant 0 : index
    %147 = vector.load %arg7[%146, %c0_42] : memref<64x512xf32, #tpu.memory_space<vmem>>, vector<8x512xf32>
    %c0_43 = arith.constant 0 : index
    %c0_44 = arith.constant 0 : index
    %148 = vector.load %arg4[%c0_43, %c0_44] : memref<128x512xf32, #tpu.memory_space<vmem>>, vector<128x512xf32>
    %cst_45 = arith.constant dense<0.000000e+00> : vector<8x512xf32>
    %149 = tpu.matmul %140, %148, %cst_45 {dimension_numbers = #tpu.dot_dimension_numbers<[1], [0], [0], [1], [0, 0, 1, 1], [], []>} : vector<8x128xf32>, vector<128x512xf32>, vector<8x512xf32> -> vector<8x512xf32>
    %150 = arith.addf %147, %149 : vector<8x512xf32>
    %151 = vector.extract_strided_slice %150 {offsets = [0, 0], sizes = [8, 384], strides = [1, 1]} : vector<8x512xf32> to vector<8x384xf32>
    %152 = arith.negf %151 : vector<8x384xf32>
    %153 = math.exp %152 : vector<8x384xf32>
    %cst_46 = arith.constant 1.000000e+00 : f32
    %154 = vector.broadcast %cst_46 : f32 to vector<8x384xf32>
    %155 = arith.addf %154, %153 : vector<8x384xf32>
    %156 = arith.divf %154, %155 : vector<8x384xf32>
    %157 = vector.extract_strided_slice %156 {offsets = [0, 0], sizes = [8, 128], strides = [1, 1]} : vector<8x384xf32> to vector<8x128xf32>
    %158 = vector.extract_strided_slice %156 {offsets = [0, 128], sizes = [8, 128], strides = [1, 1]} : vector<8x384xf32> to vector<8x128xf32>
    %159 = vector.extract_strided_slice %156 {offsets = [0, 256], sizes = [8, 128], strides = [1, 1]} : vector<8x384xf32> to vector<8x128xf32>
    %160 = vector.extract_strided_slice %150 {offsets = [0, 384], sizes = [8, 128], strides = [1, 1]} : vector<8x512xf32> to vector<8x128xf32>
    %161 = math.tanh %160 : vector<8x128xf32>
    %162 = arith.mulf %158, %138 : vector<8x128xf32>
    %163 = arith.mulf %157, %161 : vector<8x128xf32>
    %164 = arith.addf %162, %163 : vector<8x128xf32>
    %165 = math.tanh %164 : vector<8x128xf32>
    %166 = arith.mulf %159, %165 : vector<8x128xf32>
    %167 = vector.broadcast %c5_i32 : i32 to vector<8x128xi32>
    %168 = arith.cmpi eq, %12, %167 : vector<8x128xi32>
    %169 = arith.select %168, %166, %143 : vector<8x128xi1>, vector<8x128xf32>
    %c6_i32 = arith.constant 6 : i32
    %c8_i32_47 = arith.constant 8 : i32
    %170 = arith.muli %c6_i32, %c8_i32_47 : i32
    %171 = tpu.assume_multiple %170, 8 : i32
    %172 = arith.index_cast %171 : i32 to index
    %c0_48 = arith.constant 0 : index
    %173 = vector.load %arg7[%172, %c0_48] : memref<64x512xf32, #tpu.memory_space<vmem>>, vector<8x512xf32>
    %c0_49 = arith.constant 0 : index
    %c0_50 = arith.constant 0 : index
    %174 = vector.load %arg4[%c0_49, %c0_50] : memref<128x512xf32, #tpu.memory_space<vmem>>, vector<128x512xf32>
    %cst_51 = arith.constant dense<0.000000e+00> : vector<8x512xf32>
    %175 = tpu.matmul %166, %174, %cst_51 {dimension_numbers = #tpu.dot_dimension_numbers<[1], [0], [0], [1], [0, 0, 1, 1], [], []>} : vector<8x128xf32>, vector<128x512xf32>, vector<8x512xf32> -> vector<8x512xf32>
    %176 = arith.addf %173, %175 : vector<8x512xf32>
    %177 = vector.extract_strided_slice %176 {offsets = [0, 0], sizes = [8, 384], strides = [1, 1]} : vector<8x512xf32> to vector<8x384xf32>
    %178 = arith.negf %177 : vector<8x384xf32>
    %179 = math.exp %178 : vector<8x384xf32>
    %cst_52 = arith.constant 1.000000e+00 : f32
    %180 = vector.broadcast %cst_52 : f32 to vector<8x384xf32>
    %181 = arith.addf %180, %179 : vector<8x384xf32>
    %182 = arith.divf %180, %181 : vector<8x384xf32>
    %183 = vector.extract_strided_slice %182 {offsets = [0, 0], sizes = [8, 128], strides = [1, 1]} : vector<8x384xf32> to vector<8x128xf32>
    %184 = vector.extract_strided_slice %182 {offsets = [0, 128], sizes = [8, 128], strides = [1, 1]} : vector<8x384xf32> to vector<8x128xf32>
    %185 = vector.extract_strided_slice %182 {offsets = [0, 256], sizes = [8, 128], strides = [1, 1]} : vector<8x384xf32> to vector<8x128xf32>
    %186 = vector.extract_strided_slice %176 {offsets = [0, 384], sizes = [8, 128], strides = [1, 1]} : vector<8x512xf32> to vector<8x128xf32>
    %187 = math.tanh %186 : vector<8x128xf32>
    %188 = arith.mulf %184, %164 : vector<8x128xf32>
    %189 = arith.mulf %183, %187 : vector<8x128xf32>
    %190 = arith.addf %188, %189 : vector<8x128xf32>
    %191 = math.tanh %190 : vector<8x128xf32>
    %192 = arith.mulf %185, %191 : vector<8x128xf32>
    %193 = vector.broadcast %c6_i32 : i32 to vector<8x128xi32>
    %194 = arith.cmpi eq, %12, %193 : vector<8x128xi32>
    %195 = arith.select %194, %192, %169 : vector<8x128xi1>, vector<8x128xf32>
    %c7_i32 = arith.constant 7 : i32
    %c8_i32_53 = arith.constant 8 : i32
    %196 = arith.muli %c7_i32, %c8_i32_53 : i32
    %197 = tpu.assume_multiple %196, 8 : i32
    %198 = arith.index_cast %197 : i32 to index
    %c0_54 = arith.constant 0 : index
    %199 = vector.load %arg7[%198, %c0_54] : memref<64x512xf32, #tpu.memory_space<vmem>>, vector<8x512xf32>
    %c0_55 = arith.constant 0 : index
    %c0_56 = arith.constant 0 : index
    %200 = vector.load %arg4[%c0_55, %c0_56] : memref<128x512xf32, #tpu.memory_space<vmem>>, vector<128x512xf32>
    %cst_57 = arith.constant dense<0.000000e+00> : vector<8x512xf32>
    %201 = tpu.matmul %192, %200, %cst_57 {dimension_numbers = #tpu.dot_dimension_numbers<[1], [0], [0], [1], [0, 0, 1, 1], [], []>} : vector<8x128xf32>, vector<128x512xf32>, vector<8x512xf32> -> vector<8x512xf32>
    %202 = arith.addf %199, %201 : vector<8x512xf32>
    %203 = vector.extract_strided_slice %202 {offsets = [0, 0], sizes = [8, 384], strides = [1, 1]} : vector<8x512xf32> to vector<8x384xf32>
    %204 = arith.negf %203 : vector<8x384xf32>
    %205 = math.exp %204 : vector<8x384xf32>
    %cst_58 = arith.constant 1.000000e+00 : f32
    %206 = vector.broadcast %cst_58 : f32 to vector<8x384xf32>
    %207 = arith.addf %206, %205 : vector<8x384xf32>
    %208 = arith.divf %206, %207 : vector<8x384xf32>
    %209 = vector.extract_strided_slice %208 {offsets = [0, 0], sizes = [8, 128], strides = [1, 1]} : vector<8x384xf32> to vector<8x128xf32>
    %210 = vector.extract_strided_slice %208 {offsets = [0, 128], sizes = [8, 128], strides = [1, 1]} : vector<8x384xf32> to vector<8x128xf32>
    %211 = vector.extract_strided_slice %208 {offsets = [0, 256], sizes = [8, 128], strides = [1, 1]} : vector<8x384xf32> to vector<8x128xf32>
    %212 = vector.extract_strided_slice %202 {offsets = [0, 384], sizes = [8, 128], strides = [1, 1]} : vector<8x512xf32> to vector<8x128xf32>
    %213 = math.tanh %212 : vector<8x128xf32>
    %214 = arith.mulf %210, %190 : vector<8x128xf32>
    %215 = arith.mulf %209, %213 : vector<8x128xf32>
    %216 = arith.addf %214, %215 : vector<8x128xf32>
    %217 = math.tanh %216 : vector<8x128xf32>
    %218 = arith.mulf %211, %217 : vector<8x128xf32>
    %219 = vector.broadcast %c7_i32 : i32 to vector<8x128xi32>
    %220 = arith.cmpi eq, %12, %219 : vector<8x128xi32>
    %221 = arith.select %220, %218, %195 : vector<8x128xi1>, vector<8x128xf32>
    %c8_i32_59 = arith.constant 8 : i32
    %c0_60 = arith.constant 0 : index
    %c0_61 = arith.constant 0 : index
    %222 = vector.load %arg6[%c0_60, %c0_61] : memref<8x128xf32, #tpu.memory_space<vmem>>, vector<8x128xf32>
    tpu.vector_store %arg6[%c0_60, %c0_61], %221 {strides = array<i32>} : memref<8x128xf32, #tpu.memory_space<vmem>>, vector<8x128xf32>,
    return
  }
  func.func @transform_0(%arg0: i32) -> (i32, i32) {
    %c0_i32 = arith.constant 0 : i32
    %c0_i32_0 = arith.constant 0 : i32
    return %arg0, %c0_i32 : i32, i32
  }
  func.func @transform_1(%arg0: i32) -> (i32, i32, i32) {
    %c0_i32 = arith.constant 0 : i32
    %c0_i32_0 = arith.constant 0 : i32
    %c0_i32_1 = arith.constant 0 : i32
    return %c0_i32, %arg0, %c0_i32_0 : i32, i32, i32
  }
  func.func @transform_2(%arg0: i32) -> (i32, i32) {
    %c0_i32 = arith.constant 0 : i32
    %c0_i32_0 = arith.constant 0 : i32
    %c0_i32_1 = arith.constant 0 : i32
    return %c0_i32, %c0_i32_0 : i32, i32
  }
  func.func @transform_3(%arg0: i32) -> (i32, i32) {
    %c0_i32 = arith.constant 0 : i32
    %c0_i32_0 = arith.constant 0 : i32
    %c0_i32_1 = arith.constant 0 : i32
    return %c0_i32, %c0_i32_0 : i32, i32
  }
  func.func @transform_4(%arg0: i32) -> (i32, i32) {
    %c0_i32 = arith.constant 0 : i32
    %c0_i32_0 = arith.constant 0 : i32
    %c0_i32_1 = arith.constant 0 : i32
    return %c0_i32, %c0_i32_0 : i32, i32
  }
  func.func @transform_5(%arg0: i32) -> (i32, i32) {
    %c0_i32 = arith.constant 0 : i32
    %c0_i32_0 = arith.constant 0 : i32
    return %arg0, %c0_i32 : i32, i32
  }
}

</mosaic_0001>

<llo_original>
// kernel: tpu_custom_call.1
$region0: #{tpu_custom_call.1}
  #allocation0 [shape = 'u32[]', space=smem, size = 0x4, offset = 0x4, fixed_abs, tag = 'smem constant byte address 0x4 - core index']
  #allocation1 [shape = 'u32[144,128]{1,0:T(1,128)}', space=vmem, size = 0x12000, scoped, tag = 'internal scratch']
  #allocation2 [shape = 'f32[64,512]{1,0:T(8,128)}', space=vmem, size = 0x20000, scoped, tag = 'scratch operand']
  %s0 = inlined_call_operand.vmem [shape: s32[8,1], index: 0, kind: input, shape index: {}]
  %s1 = inlined_call_operand.hbm [shape: f32[8,8,128], index: 1, kind: input, shape index: {}]
  %s2 = inlined_call_operand.hbm [shape: f32[128,512], index: 2, kind: input, shape index: {}]
  %s3 = inlined_call_operand.hbm [shape: f32[128,512], index: 3, kind: input, shape index: {}]
  %s4 = inlined_call_operand.vmem [shape: f32[1,512], index: 4, kind: input, shape index: {}]
  %s5 = inlined_call_operand.hbm [shape: f32[8,128], index: 5, kind: output, shape index: {}]
  %s6 = sld [smem:[#allocation0]]
  $region42: #{tpu_custom_call.1} parent=0
    _
  %s8 = ssub.s32 1, %s6
  %s9 = scalar_select 0, %s8, %s6
  $region1: #{tpu_custom_call.1} parent=0
    #allocation3 [shape = 'u8[32768]{0}', space=vmem, size = 0x8000, scoped, tag = 'input window, operand 1, single buffered']
    #allocation4 [shape = 's32[1]{0}', space=sflag, size = 0x4, scoped, tag = 'scoped memory for tpu_custom_call.1']
    #allocation5 [shape = 's32[1]{0}', space=sflag, size = 0x4, scoped, tag = 'scoped memory for tpu_custom_call.1']
    #allocation6 [shape = 'u8[262144]{0}', space=vmem, size = 0x40000, scoped, tag = 'input window, operand 2, single buffered']
    #allocation7 [shape = 's32[1]{0}', space=sflag, size = 0x4, scoped, tag = 'scoped memory for tpu_custom_call.1']
    #allocation8 [shape = 'u8[262144]{0}', space=vmem, size = 0x40000, scoped, tag = 'input window, operand 3, single buffered']
    #allocation9 [shape = 'u8[4096]{0}', space=vmem, size = 0x1000, scoped, tag = 'output window, operand 0, single buffered']
    %10 = vsyncpa [#allocation4], 0
    %11 = vsyncpa [#allocation7], 0
    %12 = vsyncpa [#allocation5], 0
    // Predicated region
    $region2: #{tpu_custom_call.1} parent=1 // pred_check
      _
    $region3: #{tpu_custom_call.1} parent=1 // pred_check_branch
      %14 = sbr.rel (0) target = $region5
    $region4: #{tpu_custom_call.1} parent=1 // pred_region
      _
    $region5: #{tpu_custom_call.1} parent=1 // pred_fallthru
      _
    // Predicated region
    $region6: #{tpu_custom_call.1} parent=1 // pred_check
      _
    $region7: #{tpu_custom_call.1} parent=1 // pred_check_branch
      %16 = sbr.rel (0) target = $region9
    $region8: #{tpu_custom_call.1} parent=1 // pred_region
      %s18 = ssub.s32 1024, 1024
      %19 = vsyncadd [#allocation4], %s18
      %s20 = sshll.u32 [#allocation3], 4
      %s21 = int_to_ptr.vmem [resolvable:$true] %s20
      %26 = dma.hbm_to_vmem [thread:$0]  %s1, 1024, %s21, [#allocation4], 128, 128, 8
    $region9: #{tpu_custom_call.1} parent=1 // pred_fallthru
      _
    // Predicated region
    $region10: #{tpu_custom_call.1} parent=1 // pred_check
      _
    $region11: #{tpu_custom_call.1} parent=1 // pred_check_branch
      %28 = sbr.rel (0) target = $region13
    $region12: #{tpu_custom_call.1} parent=1 // pred_region
      %s30 = ssub.s32 8192, 8192
      %31 = vsyncadd [#allocation7], %s30
      %s32 = sshll.u32 [#allocation6], 4
      %s33 = int_to_ptr.vmem [resolvable:$true] %s32
      %38 = dma.hbm_to_vmem [thread:$0]  %s2, 8192, %s33, [#allocation7], 512, 512, 32
    $region13: #{tpu_custom_call.1} parent=1 // pred_fallthru
      _
    // Predicated region
    $region14: #{tpu_custom_call.1} parent=1 // pred_check
      _
    $region15: #{tpu_custom_call.1} parent=1 // pred_check_branch
      %40 = sbr.rel (0) target = $region17
    $region16: #{tpu_custom_call.1} parent=1 // pred_region
      %s42 = ssub.s32 8192, 8192
      %43 = vsyncadd [#allocation7], %s42
      %s44 = sshll.u32 [#allocation8], 4
      %s45 = int_to_ptr.vmem [resolvable:$true] %s44
      %50 = dma.hbm_to_vmem [thread:$0]  %s3, 8192, %s45, [#allocation7], 512, 512, 32
    $region17: #{tpu_custom_call.1} parent=1 // pred_fallthru
      _
    // Predicated region
    $region18: #{tpu_custom_call.1} parent=1 // pred_check
      _
    $region19: #{tpu_custom_call.1} parent=1 // pred_check_branch
      %52 = sbr.rel (0) target = $region21
    $region20: #{tpu_custom_call.1} parent=1 // pred_region
      _
    $region21: #{tpu_custom_call.1} parent=1 // pred_fallthru
      _
    // Predicated region
    $region22: #{tpu_custom_call.1} parent=1 // pred_check
      _
    $region23: #{tpu_custom_call.1} parent=1 // pred_check_branch
      %54 = sbr.rel (0) target = $region25
    $region24: #{tpu_custom_call.1} parent=1 // pred_region
      %55 = dma.done [#allocation4], 1024
    $region25: #{tpu_custom_call.1} parent=1 // pred_fallthru
      _
    // Predicated region
    $region26: #{tpu_custom_call.1} parent=1 // pred_check
      _
    $region27: #{tpu_custom_call.1} parent=1 // pred_check_branch
      %57 = sbr.rel (0) target = $region29
    $region28: #{tpu_custom_call.1} parent=1 // pred_region
      %58 = dma.done [#allocation7], 8192
    $region29: #{tpu_custom_call.1} parent=1 // pred_fallthru
      _
    // Predicated region
    $region30: #{tpu_custom_call.1} parent=1 // pred_check
      _
    $region31: #{tpu_custom_call.1} parent=1 // pred_check_branch
      %60 = sbr.rel (0) target = $region33
    $region32: #{tpu_custom_call.1} parent=1 // pred_region
      %61 = dma.done [#allocation7], 8192
    $region33: #{tpu_custom_call.1} parent=1 // pred_fallthru
      _
    %v62 = vld [vmem:[#allocation3] sm:$0xff]
    %v63 = vld [vmem:[#allocation3 + $0x8] sm:$0xff]
    %v64 = vld [vmem:[#allocation3 + $0x10] sm:$0xff]
    %v65 = vld [vmem:[#allocation3 + $0x18] sm:$0xff]
    %v66 = vld [vmem:[#allocation3 + $0x20] sm:$0xff]
    %v67 = vld [vmem:[#allocation3 + $0x28] sm:$0xff]
    %v68 = vld [vmem:[#allocation3 + $0x30] sm:$0xff]
    %v69 = vld [vmem:[#allocation3 + $0x38] sm:$0xff]
    %v70 = vld [vmem:[#allocation6] sm:$0xff]
    %v71 = vld [vmem:[#allocation6 + $0x8] sm:$0xff]
    %v72 = vld [vmem:[#allocation6 + $0x10] sm:$0xff]
    %v73 = vld [vmem:[#allocation6 + $0x18] sm:$0xff]
    %v74 = vld [vmem:[#allocation6 + $0x20] sm:$0xff]
    %v75 = vld [vmem:[#allocation6 + $0x28] sm:$0xff]
    %v76 = vld [vmem:[#allocation6 + $0x30] sm:$0xff]
    %v77 = vld [vmem:[#allocation6 + $0x38] sm:$0xff]
    %v78 = vld [vmem:[#allocation6 + $0x40] sm:$0xff]
    %v79 = vld [vmem:[#allocation6 + $0x48] sm:$0xff]
    %v80 = vld [vmem:[#allocation6 + $0x50] sm:$0xff]
    %v81 = vld [vmem:[#allocation6 + $0x58] sm:$0xff]
    %v82 = vld [vmem:[#allocation6 + $0x60] sm:$0xff]
    %v83 = vld [vmem:[#allocation6 + $0x68] sm:$0xff]
    %v84 = vld [vmem:[#allocation6 + $0x70] sm:$0xff]
    %v85 = vld [vmem:[#allocation6 + $0x78] sm:$0xff]
    %v86 = vld [vmem:[#allocation6 + $0x80] sm:$0xff]
    %v87 = vld [vmem:[#allocation6 + $0x88] sm:$0xff]
    %v88 = vld [vmem:[#allocation6 + $0x90] sm:$0xff]
    %v89 = vld [vmem:[#allocation6 + $0x98] sm:$0xff]
    %v90 = vld [vmem:[#allocation6 + $0xa0] sm:$0xff]
    %v91 = vld [vmem:[#allocation6 + $0xa8] sm:$0xff]
    %v92 = vld [vmem:[#allocation6 + $0xb0] sm:$0xff]
    %v93 = vld [vmem:[#allocation6 + $0xb8] sm:$0xff]
    %v94 = vld [vmem:[#allocation6 + $0xc0] sm:$0xff]
    %v95 = vld [vmem:[#allocation6 + $0xc8] sm:$0xff]
    %v96 = vld [vmem:[#allocation6 + $0xd0] sm:$0xff]
    %v97 = vld [vmem:[#allocation6 + $0xd8] sm:$0xff]
    %v98 = vld [vmem:[#allocation6 + $0xe0] sm:$0xff]
    %v99 = vld [vmem:[#allocation6 + $0xe8] sm:$0xff]
    %v100 = vld [vmem:[#allocation6 + $0xf0] sm:$0xff]
    %v101 = vld [vmem:[#allocation6 + $0xf8] sm:$0xff]
    %v102 = vld [vmem:[#allocation6 + $0x100] sm:$0xff]
    %v103 = vld [vmem:[#allocation6 + $0x108] sm:$0xff]
    %v104 = vld [vmem:[#allocation6 + $0x110] sm:$0xff]
    %v105 = vld [vmem:[#allocation6 + $0x118] sm:$0xff]
    %v106 = vld [vmem:[#allocation6 + $0x120] sm:$0xff]
    %v107 = vld [vmem:[#allocation6 + $0x128] sm:$0xff]
    %v108 = vld [vmem:[#allocation6 + $0x130] sm:$0xff]
    %v109 = vld [vmem:[#allocation6 + $0x138] sm:$0xff]
    %v110 = vld [vmem:[#allocation6 + $0x140] sm:$0xff]
    %v111 = vld [vmem:[#allocation6 + $0x148] sm:$0xff]
    %v112 = vld [vmem:[#allocation6 + $0x150] sm:$0xff]
    %v113 = vld [vmem:[#allocation6 + $0x158] sm:$0xff]
    %v114 = vld [vmem:[#allocation6 + $0x160] sm:$0xff]
    %v115 = vld [vmem:[#allocation6 + $0x168] sm:$0xff]
    %v116 = vld [vmem:[#allocation6 + $0x170] sm:$0xff]
    %v117 = vld [vmem:[#allocation6 + $0x178] sm:$0xff]
    %v118 = vld [vmem:[#allocation6 + $0x180] sm:$0xff]
    %v119 = vld [vmem:[#allocation6 + $0x188] sm:$0xff]
    %v120 = vld [vmem:[#allocation6 + $0x190] sm:$0xff]
    %v121 = vld [vmem:[#allocation6 + $0x198] sm:$0xff]
    %v122 = vld [vmem:[#allocation6 + $0x1a0] sm:$0xff]
    %v123 = vld [vmem:[#allocation6 + $0x1a8] sm:$0xff]
    %v124 = vld [vmem:[#allocation6 + $0x1b0] sm:$0xff]
    %v125 = vld [vmem:[#allocation6 + $0x1b8] sm:$0xff]
    %v126 = vld [vmem:[#allocation6 + $0x1c0] sm:$0xff]
    %v127 = vld [vmem:[#allocation6 + $0x1c8] sm:$0xff]
    %v128 = vld [vmem:[#allocation6 + $0x1d0] sm:$0xff]
    %v129 = vld [vmem:[#allocation6 + $0x1d8] sm:$0xff]
    %v130 = vld [vmem:[#allocation6 + $0x1e0] sm:$0xff]
    %v131 = vld [vmem:[#allocation6 + $0x1e8] sm:$0xff]
    %v132 = vld [vmem:[#allocation6 + $0x1f0] sm:$0xff]
    %v133 = vld [vmem:[#allocation6 + $0x1f8] sm:$0xff]
    %v134 = vld [vmem:[%s4] sm:$0xf]
    %v136 = vlaneseq
    %v137 = vshrl.u32 %v136, 7
    %v138 = vsub.s32 0, %v137
    %v139 = vrot.slane %v134, %v138
    %v140 = vlaneseq
    %v141 = vshrl.u32 %v140, 7
    %v142 = vsub.s32 1, %v141
    %v143 = vrot.slane %v134, %v142
    %v144 = vlaneseq
    %v145 = vshrl.u32 %v144, 7
    %v146 = vsub.s32 2, %v145
    %v147 = vrot.slane %v134, %v146
    %v148 = vlaneseq
    %v149 = vshrl.u32 %v148, 7
    %v150 = vsub.s32 3, %v149
    %v151 = vrot.slane %v134, %v150
    %156 = vmatprep.subr.mxu0 %v71
    %157 = vmatpush1.msra.mxu0 %v70
    %158 = vmatprep.subr.mxu0 %v75
    %159 = vmatpush1.msra.mxu0 %v74
    %160 = vmatprep.subr.mxu0 %v79
    %161 = vmatpush1.msra.mxu0 %v78
    %162 = vmatprep.subr.mxu0 %v83
    %163 = vmatpush1.msra.mxu0 %v82
    %164 = vmatprep.subr.mxu0 %v87
    %165 = vmatpush1.msra.mxu0 %v86
    %166 = vmatprep.subr.mxu0 %v91
    %167 = vmatpush1.msra.mxu0 %v90
    %168 = vmatprep.subr.mxu0 %v95
    %169 = vmatpush1.msra.mxu0 %v94
    %170 = vmatprep.subr.mxu0 %v99
    %171 = vmatpush1.msra.mxu0 %v98
    %172 = vmatprep.subr.mxu0 %v103
    %173 = vmatpush1.msra.mxu0 %v102
    %174 = vmatprep.subr.mxu0 %v107
    %175 = vmatpush1.msra.mxu0 %v106
    %176 = vmatprep.subr.mxu0 %v111
    %177 = vmatpush1.msra.mxu0 %v110
    %178 = vmatprep.subr.mxu0 %v115
    %179 = vmatpush1.msra.mxu0 %v114
    %180 = vmatprep.subr.mxu0 %v119
    %181 = vmatpush1.msra.mxu0 %v118
    %182 = vmatprep.subr.mxu0 %v123
    %183 = vmatpush1.msra.mxu0 %v122
    %184 = vmatprep.subr.mxu0 %v127
    %185 = vmatpush1.msra.mxu0 %v126
    %186 = vmatprep.subr.mxu0 %v131
    %187 = vmatpush1.msra.mxu0 %v130
    %188 = vmatprep.subr.mxu0 0.0
    %189 = vmatpush1.msra.mxu0 0.0
    %190 = vmatprep.subr.mxu0 0.0
    %191 = vmatpush1.msra.mxu0 0.0
    %192 = vmatprep.subr.mxu0 0.0
    %193 = vmatpush1.msra.mxu0 0.0
    %194 = vmatprep.subr.mxu0 0.0
    %195 = vmatpush1.msra.mxu0 0.0
    %196 = vmatprep.subr.mxu0 0.0
    %197 = vmatpush1.msra.mxu0 0.0
    %198 = vmatprep.subr.mxu0 0.0
    %199 = vmatpush1.msra.mxu0 0.0
    %200 = vmatprep.subr.mxu0 0.0
    %201 = vmatpush1.msra.mxu0 0.0
    %202 = vmatprep.subr.mxu0 0.0
    %203 = vmatpush1.msra.mxu0 0.0
    %204 = vmatprep.subr.mxu0 0.0
    %205 = vmatpush1.msra.mxu0 0.0
    %206 = vmatprep.subr.mxu0 0.0
    %207 = vmatpush1.msra.mxu0 0.0
    %208 = vmatprep.subr.mxu0 0.0
    %209 = vmatpush1.msra.mxu0 0.0
    %210 = vmatprep.subr.mxu0 0.0
    %211 = vmatpush1.msra.mxu0 0.0
    %212 = vmatprep.subr.mxu0 0.0
    %213 = vmatpush1.msra.mxu0 0.0
    %214 = vmatprep.subr.mxu0 0.0
    %215 = vmatpush1.msra.mxu0 0.0
    %216 = vmatprep.subr.mxu0 0.0
    %217 = vmatpush1.msra.mxu0 0.0
    %218 = vmatprep.subr.mxu0 0.0
    %219 = vmatpush1.msra.mxu0 0.0
    %220 = vmatprep.mubr.f32.mxu0 0.0
    %221 = vmatmul.mubr.f32.gmra.mrb[0].mxu0 %v62
    %v222 = vpop.f32.mrb[0].mxu0
    %v223 = vadd.f32 %v139, %v222
    %v224 = vpop.f32.mrb[0].mxu0
    %v225 = vadd.f32 %v143, %v224
    %226 = vmatprep.mubr.f32.mxu0 0.0
    %227 = vmatmul.mubr.f32.gmra.mrb[0].mxu0 %v63
    %v228 = vpop.f32.mrb[0].mxu0
    %v229 = vadd.f32 %v139, %v228
    %v230 = vpop.f32.mrb[0].mxu0
    %v231 = vadd.f32 %v143, %v230
    %232 = vmatprep.mubr.f32.mxu0 0.0
    %233 = vmatmul.mubr.f32.gmra.mrb[0].mxu0 %v64
    %v234 = vpop.f32.mrb[0].mxu0
    %v235 = vadd.f32 %v139, %v234
    %v236 = vpop.f32.mrb[0].mxu0
    %v237 = vadd.f32 %v143, %v236
    %238 = vmatprep.mubr.f32.mxu0 0.0
    %239 = vmatmul.mubr.f32.gmra.mrb[0].mxu0 %v65
    %v240 = vpop.f32.mrb[0].mxu0
    %v241 = vadd.f32 %v139, %v240
    %v242 = vpop.f32.mrb[0].mxu0
    %v243 = vadd.f32 %v143, %v242
    %244 = vmatprep.mubr.f32.mxu0 0.0
    %245 = vmatmul.mubr.f32.gmra.mrb[0].mxu0 %v66
    %v246 = vpop.f32.mrb[0].mxu0
    %v247 = vadd.f32 %v139, %v246
    %v248 = vpop.f32.mrb[0].mxu0
    %v249 = vadd.f32 %v143, %v248
    %250 = vmatprep.mubr.f32.mxu0 0.0
    %251 = vmatmul.mubr.f32.gmra.mrb[0].mxu0 %v67
    %v252 = vpop.f32.mrb[0].mxu0
    %v253 = vadd.f32 %v139, %v252
    %v254 = vpop.f32.mrb[0].mxu0
    %v255 = vadd.f32 %v143, %v254
    %256 = vmatprep.mubr.f32.mxu0 0.0
    %257 = vmatmul.mubr.f32.gmra.mrb[0].mxu0 %v68
    %v258 = vpop.f32.mrb[0].mxu0
    %v259 = vadd.f32 %v139, %v258
    %v260 = vpop.f32.mrb[0].mxu0
    %v261 = vadd.f32 %v143, %v260
    %262 = vmatprep.mubr.f32.mxu0 0.0
    %263 = vmatmul.mubr.f32.gmra.mrb[0].mxu0 %v69
    %v264 = vpop.f32.mrb[0].mxu0
    %v265 = vadd.f32 %v139, %v264
    %v266 = vpop.f32.mrb[0].mxu0
    %v267 = vadd.f32 %v143, %v266
    %268 = vdwg.mxu0
    %269 = vmatprep.subr.mxu0 %v73
    %270 = vmatpush1.msra.mxu0 %v72
    %271 = vmatprep.subr.mxu0 %v77
    %272 = vmatpush1.msra.mxu0 %v76
    %273 = vmatprep.subr.mxu0 %v81
    %274 = vmatpush1.msra.mxu0 %v80
    %275 = vmatprep.subr.mxu0 %v85
    %276 = vmatpush1.msra.mxu0 %v84
    %277 = vmatprep.subr.mxu0 %v89
    %278 = vmatpush1.msra.mxu0 %v88
    %279 = vmatprep.subr.mxu0 %v93
    %280 = vmatpush1.msra.mxu0 %v92
    %281 = vmatprep.subr.mxu0 %v97
    %282 = vmatpush1.msra.mxu0 %v96
    %283 = vmatprep.subr.mxu0 %v101
    %284 = vmatpush1.msra.mxu0 %v100
    %285 = vmatprep.subr.mxu0 %v105
    %286 = vmatpush1.msra.mxu0 %v104
    %287 = vmatprep.subr.mxu0 %v109
    %288 = vmatpush1.msra.mxu0 %v108
    %289 = vmatprep.subr.mxu0 %v113
    %290 = vmatpush1.msra.mxu0 %v112
    %291 = vmatprep.subr.mxu0 %v117
    %292 = vmatpush1.msra.mxu0 %v116
    %293 = vmatprep.subr.mxu0 %v121
    %294 = vmatpush1.msra.mxu0 %v120
    %295 = vmatprep.subr.mxu0 %v125
    %296 = vmatpush1.msra.mxu0 %v124
    %297 = vmatprep.subr.mxu0 %v129
    %298 = vmatpush1.msra.mxu0 %v128
    %299 = vmatprep.subr.mxu0 %v133
    %300 = vmatpush1.msra.mxu0 %v132
    %301 = vmatprep.subr.mxu0 0.0
    %302 = vmatpush1.msra.mxu0 0.0
    %303 = vmatprep.subr.mxu0 0.0
    %304 = vmatpush1.msra.mxu0 0.0
    %305 = vmatprep.subr.mxu0 0.0
    %306 = vmatpush1.msra.mxu0 0.0
    %307 = vmatprep.subr.mxu0 0.0
    %308 = vmatpush1.msra.mxu0 0.0
    %309 = vmatprep.subr.mxu0 0.0
    %310 = vmatpush1.msra.mxu0 0.0
    %311 = vmatprep.subr.mxu0 0.0
    %312 = vmatpush1.msra.mxu0 0.0
    %313 = vmatprep.subr.mxu0 0.0
    %314 = vmatpush1.msra.mxu0 0.0
    %315 = vmatprep.subr.mxu0 0.0
    %316 = vmatpush1.msra.mxu0 0.0
    %317 = vmatprep.subr.mxu0 0.0
    %318 = vmatpush1.msra.mxu0 0.0
    %319 = vmatprep.subr.mxu0 0.0
    %320 = vmatpush1.msra.mxu0 0.0
    %321 = vmatprep.subr.mxu0 0.0
    %322 = vmatpush1.msra.mxu0 0.0
    %323 = vmatprep.subr.mxu0 0.0
    %324 = vmatpush1.msra.mxu0 0.0
    %325 = vmatprep.subr.mxu0 0.0
    %326 = vmatpush1.msra.mxu0 0.0
    %327 = vmatprep.subr.mxu0 0.0
    %328 = vmatpush1.msra.mxu0 0.0
    %329 = vmatprep.subr.mxu0 0.0
    %330 = vmatpush1.msra.mxu0 0.0
    %331 = vmatprep.subr.mxu0 0.0
    %332 = vmatpush1.msra.mxu0 0.0
    %333 = vmatprep.mubr.f32.mxu0 0.0
    %334 = vmatmul.mubr.f32.gmra.mrb[0].mxu0 %v62
    %v335 = vpop.f32.mrb[0].mxu0
    %v336 = vadd.f32 %v147, %v335
    %v337 = vpop.f32.mrb[0].mxu0
    %v338 = vadd.f32 %v151, %v337
    %339 = vmatprep.mubr.f32.mxu0 0.0
    %340 = vmatmul.mubr.f32.gmra.mrb[0].mxu0 %v63
    %v341 = vpop.f32.mrb[0].mxu0
    %v342 = vadd.f32 %v147, %v341
    %v343 = vpop.f32.mrb[0].mxu0
    %v344 = vadd.f32 %v151, %v343
    %345 = vmatprep.mubr.f32.mxu0 0.0
    %346 = vmatmul.mubr.f32.gmra.mrb[0].mxu0 %v64
    %v347 = vpop.f32.mrb[0].mxu0
    %v348 = vadd.f32 %v147, %v347
    %v349 = vpop.f32.mrb[0].mxu0
    %v350 = vadd.f32 %v151, %v349
    %351 = vmatprep.mubr.f32.mxu0 0.0
    %352 = vmatmul.mubr.f32.gmra.mrb[0].mxu0 %v65
    %v353 = vpop.f32.mrb[0].mxu0
    %v354 = vadd.f32 %v147, %v353
    %v355 = vpop.f32.mrb[0].mxu0
    %v356 = vadd.f32 %v151, %v355
    %357 = vmatprep.mubr.f32.mxu0 0.0
    %358 = vmatmul.mubr.f32.gmra.mrb[0].mxu0 %v66
    %v359 = vpop.f32.mrb[0].mxu0
    %v360 = vadd.f32 %v147, %v359
    %v361 = vpop.f32.mrb[0].mxu0
    %v362 = vadd.f32 %v151, %v361
    %363 = vmatprep.mubr.f32.mxu0 0.0
    %364 = vmatmul.mubr.f32.gmra.mrb[0].mxu0 %v67
    %v365 = vpop.f32.mrb[0].mxu0
    %v366 = vadd.f32 %v147, %v365
    %v367 = vpop.f32.mrb[0].mxu0
    %v368 = vadd.f32 %v151, %v367
    %369 = vmatprep.mubr.f32.mxu0 0.0
    %370 = vmatmul.mubr.f32.gmra.mrb[0].mxu0 %v68
    %v371 = vpop.f32.mrb[0].mxu0
    %v372 = vadd.f32 %v147, %v371
    %v373 = vpop.f32.mrb[0].mxu0
    %v374 = vadd.f32 %v151, %v373
    %375 = vmatprep.mubr.f32.mxu0 0.0
    %376 = vmatmul.mubr.f32.gmra.mrb[0].mxu0 %v69
    %v377 = vpop.f32.mrb[0].mxu0
    %v378 = vadd.f32 %v147, %v377
    %v379 = vpop.f32.mrb[0].mxu0
    %v380 = vadd.f32 %v151, %v379
    %381 = vdwg.mxu0
    %382 = vst [vmem:[#allocation2] sm:$0xff] %v223
    %383 = vst [vmem:[#allocation2 + $0x8] sm:$0xff] %v225
    %384 = vst [vmem:[#allocation2 + $0x10] sm:$0xff] %v336
    %385 = vst [vmem:[#allocation2 + $0x18] sm:$0xff] %v338
    %386 = vst [vmem:[#allocation2 + $0x20] sm:$0xff] %v229
    %387 = vst [vmem:[#allocation2 + $0x28] sm:$0xff] %v231
    %388 = vst [vmem:[#allocation2 + $0x30] sm:$0xff] %v342
    %389 = vst [vmem:[#allocation2 + $0x38] sm:$0xff] %v344
    %390 = vst [vmem:[#allocation2 + $0x40] sm:$0xff] %v235
    %391 = vst [vmem:[#allocation2 + $0x48] sm:$0xff] %v237
    %392 = vst [vmem:[#allocation2 + $0x50] sm:$0xff] %v348
    %393 = vst [vmem:[#allocation2 + $0x58] sm:$0xff] %v350
    %394 = vst [vmem:[#allocation2 + $0x60] sm:$0xff] %v241
    %395 = vst [vmem:[#allocation2 + $0x68] sm:$0xff] %v243
    %396 = vst [vmem:[#allocation2 + $0x70] sm:$0xff] %v354
    %397 = vst [vmem:[#allocation2 + $0x78] sm:$0xff] %v356
    %398 = vst [vmem:[#allocation2 + $0x80] sm:$0xff] %v247
    %399 = vst [vmem:[#allocation2 + $0x88] sm:$0xff] %v249
    %400 = vst [vmem:[#allocation2 + $0x90] sm:$0xff] %v360
    %401 = vst [vmem:[#allocation2 + $0x98] sm:$0xff] %v362
    %402 = vst [vmem:[#allocation2 + $0xa0] sm:$0xff] %v253
    %403 = vst [vmem:[#allocation2 + $0xa8] sm:$0xff] %v255
    %404 = vst [vmem:[#allocation2 + $0xb0] sm:$0xff] %v366
    %405 = vst [vmem:[#allocation2 + $0xb8] sm:$0xff] %v368
    %406 = vst [vmem:[#allocation2 + $0xc0] sm:$0xff] %v259
    %407 = vst [vmem:[#allocation2 + $0xc8] sm:$0xff] %v261
    %408 = vst [vmem:[#allocation2 + $0xd0] sm:$0xff] %v372
    %409 = vst [vmem:[#allocation2 + $0xd8] sm:$0xff] %v374
    %410 = vst [vmem:[#allocation2 + $0xe0] sm:$0xff] %v265
    %411 = vst [vmem:[#allocation2 + $0xe8] sm:$0xff] %v267
    %412 = vst [vmem:[#allocation2 + $0xf0] sm:$0xff] %v378
    %413 = vst [vmem:[#allocation2 + $0xf8] sm:$0xff] %v380
    %v414 = vld [vmem:[%s0] sm:$0xff]
    %415 = vset.pattern.permute.xlu0 0
    %416 = vperm.xlu0 %415, %v414
    %v417 = vpop.permute.xlu0 %416
    %v418 = vsub.s32 %v417, 1
    %s419 = smul.u32 0, 4
    %s420 = smul.addr %s419, 8
    %s421 = scalar_lea.vmem [#allocation2], %s420
    %v422 = vld [vmem:[%s421] sm:$0xff]
    %v423 = vld [vmem:[%s421 + $0x8] sm:$0xff]
    %v424 = vld [vmem:[%s421 + $0x10] sm:$0xff]
    %v425 = vld [vmem:[%s421 + $0x18] sm:$0xff]
    %v426 = vld [vmem:[#allocation8] sm:$0xff]
    %v427 = vld [vmem:[#allocation8 + $0x8] sm:$0xff]
    %v428 = vld [vmem:[#allocation8 + $0x10] sm:$0xff]
    %v429 = vld [vmem:[#allocation8 + $0x18] sm:$0xff]
    %v430 = vld [vmem:[#allocation8 + $0x20] sm:$0xff]
    %v431 = vld [vmem:[#allocation8 + $0x28] sm:$0xff]
    %v432 = vld [vmem:[#allocation8 + $0x30] sm:$0xff]
    %v433 = vld [vmem:[#allocation8 + $0x38] sm:$0xff]
    %v434 = vld [vmem:[#allocation8 + $0x40] sm:$0xff]
    %v435 = vld [vmem:[#allocation8 + $0x48] sm:$0xff]
    %v436 = vld [vmem:[#allocation8 + $0x50] sm:$0xff]
    %v437 = vld [vmem:[#allocation8 + $0x58] sm:$0xff]
    %v438 = vld [vmem:[#allocation8 + $0x60] sm:$0xff]
    %v439 = vld [vmem:[#allocation8 + $0x68] sm:$0xff]
    %v440 = vld [vmem:[#allocation8 + $0x70] sm:$0xff]
    %v441 = vld [vmem:[#allocation8 + $0x78] sm:$0xff]
    %v442 = vld [vmem:[#allocation8 + $0x80] sm:$0xff]
    %v443 = vld [vmem:[#allocation8 + $0x88] sm:$0xff]
    %v444 = vld [vmem:[#allocation8 + $0x90] sm:$0xff]
    %v445 = vld [vmem:[#allocation8 + $0x98] sm:$0xff]
    %v446 = vld [vmem:[#allocation8 + $0xa0] sm:$0xff]
    %v447 = vld [vmem:[#allocation8 + $0xa8] sm:$0xff]
    %v448 = vld [vmem:[#allocation8 + $0xb0] sm:$0xff]
    %v449 = vld [vmem:[#allocation8 + $0xb8] sm:$0xff]
    %v450 = vld [vmem:[#allocation8 + $0xc0] sm:$0xff]
    %v451 = vld [vmem:[#allocation8 + $0xc8] sm:$0xff]
    %v452 = vld [vmem:[#allocation8 + $0xd0] sm:$0xff]
    %v453 = vld [vmem:[#allocation8 + $0xd8] sm:$0xff]
    %v454 = vld [vmem:[#allocation8 + $0xe0] sm:$0xff]
    %v455 = vld [vmem:[#allocation8 + $0xe8] sm:$0xff]
    %v456 = vld [vmem:[#allocation8 + $0xf0] sm:$0xff]
    %v457 = vld [vmem:[#allocation8 + $0xf8] sm:$0xff]
    %v458 = vld [vmem:[#allocation8 + $0x100] sm:$0xff]
    %v459 = vld [vmem:[#allocation8 + $0x108] sm:$0xff]
    %v460 = vld [vmem:[#allocation8 + $0x110] sm:$0xff]
    %v461 = vld [vmem:[#allocation8 + $0x118] sm:$0xff]
    %v462 = vld [vmem:[#allocation8 + $0x120] sm:$0xff]
    %v463 = vld [vmem:[#allocation8 + $0x128] sm:$0xff]
    %v464 = vld [vmem:[#allocation8 + $0x130] sm:$0xff]
    %v465 = vld [vmem:[#allocation8 + $0x138] sm:$0xff]
    %v466 = vld [vmem:[#allocation8 + $0x140] sm:$0xff]
    %v467 = vld [vmem:[#allocation8 + $0x148] sm:$0xff]
    %v468 = vld [vmem:[#allocation8 + $0x150] sm:$0xff]
    %v469 = vld [vmem:[#allocation8 + $0x158] sm:$0xff]
    %v470 = vld [vmem:[#allocation8 + $0x160] sm:$0xff]
    %v471 = vld [vmem:[#allocation8 + $0x168] sm:$0xff]
    %v472 = vld [vmem:[#allocation8 + $0x170] sm:$0xff]
    %v473 = vld [vmem:[#allocation8 + $0x178] sm:$0xff]
    %v474 = vld [vmem:[#allocation8 + $0x180] sm:$0xff]
    %v475 = vld [vmem:[#allocation8 + $0x188] sm:$0xff]
    %v476 = vld [vmem:[#allocation8 + $0x190] sm:$0xff]
    %v477 = vld [vmem:[#allocation8 + $0x198] sm:$0xff]
    %v478 = vld [vmem:[#allocation8 + $0x1a0] sm:$0xff]
    %v479 = vld [vmem:[#allocation8 + $0x1a8] sm:$0xff]
    %v480 = vld [vmem:[#allocation8 + $0x1b0] sm:$0xff]
    %v481 = vld [vmem:[#allocation8 + $0x1b8] sm:$0xff]
    %v482 = vld [vmem:[#allocation8 + $0x1c0] sm:$0xff]
    %v483 = vld [vmem:[#allocation8 + $0x1c8] sm:$0xff]
    %v484 = vld [vmem:[#allocation8 + $0x1d0] sm:$0xff]
    %v485 = vld [vmem:[#allocation8 + $0x1d8] sm:$0xff]
    %v486 = vld [vmem:[#allocation8 + $0x1e0] sm:$0xff]
    %v487 = vld [vmem:[#allocation8 + $0x1e8] sm:$0xff]
    %v488 = vld [vmem:[#allocation8 + $0x1f0] sm:$0xff]
    %v489 = vld [vmem:[#allocation8 + $0x1f8] sm:$0xff]
    %490 = vmatprep.subr.mxu0 %v427
    %491 = vmatpush1.msra.mxu0 %v426
    %492 = vmatprep.subr.mxu0 %v431
    %493 = vmatpush1.msra.mxu0 %v430
    %494 = vmatprep.subr.mxu0 %v435
    %495 = vmatpush1.msra.mxu0 %v434
    %496 = vmatprep.subr.mxu0 %v439
    %497 = vmatpush1.msra.mxu0 %v438
    %498 = vmatprep.subr.mxu0 %v443
    %499 = vmatpush1.msra.mxu0 %v442
    %500 = vmatprep.subr.mxu0 %v447
    %501 = vmatpush1.msra.mxu0 %v446
    %502 = vmatprep.subr.mxu0 %v451
    %503 = vmatpush1.msra.mxu0 %v450
    %504 = vmatprep.subr.mxu0 %v455
    %505 = vmatpush1.msra.mxu0 %v454
    %506 = vmatprep.subr.mxu0 %v459
    %507 = vmatpush1.msra.mxu0 %v458
    %508 = vmatprep.subr.mxu0 %v463
    %509 = vmatpush1.msra.mxu0 %v462
    %510 = vmatprep.subr.mxu0 %v467
    %511 = vmatpush1.msra.mxu0 %v466
    %512 = vmatprep.subr.mxu0 %v471
    %513 = vmatpush1.msra.mxu0 %v470
    %514 = vmatprep.subr.mxu0 %v475
    %515 = vmatpush1.msra.mxu0 %v474
    %516 = vmatprep.subr.mxu0 %v479
    %517 = vmatpush1.msra.mxu0 %v478
    %518 = vmatprep.subr.mxu0 %v483
    %519 = vmatpush1.msra.mxu0 %v482
    %520 = vmatprep.subr.mxu0 %v487
    %521 = vmatpush1.msra.mxu0 %v486
    %522 = vmatprep.subr.mxu0 0.0
    %523 = vmatpush1.msra.mxu0 0.0
    %524 = vmatprep.subr.mxu0 0.0
    %525 = vmatpush1.msra.mxu0 0.0
    %526 = vmatprep.subr.mxu0 0.0
    %527 = vmatpush1.msra.mxu0 0.0
    %528 = vmatprep.subr.mxu0 0.0
    %529 = vmatpush1.msra.mxu0 0.0
    %530 = vmatprep.subr.mxu0 0.0
    %531 = vmatpush1.msra.mxu0 0.0
    %532 = vmatprep.subr.mxu0 0.0
    %533 = vmatpush1.msra.mxu0 0.0
    %534 = vmatprep.subr.mxu0 0.0
    %535 = vmatpush1.msra.mxu0 0.0
    %536 = vmatprep.subr.mxu0 0.0
    %537 = vmatpush1.msra.mxu0 0.0
    %538 = vmatprep.subr.mxu0 0.0
    %539 = vmatpush1.msra.mxu0 0.0
    %540 = vmatprep.subr.mxu0 0.0
    %541 = vmatpush1.msra.mxu0 0.0
    %542 = vmatprep.subr.mxu0 0.0
    %543 = vmatpush1.msra.mxu0 0.0
    %544 = vmatprep.subr.mxu0 0.0
    %545 = vmatpush1.msra.mxu0 0.0
    %546 = vmatprep.subr.mxu0 0.0
    %547 = vmatpush1.msra.mxu0 0.0
    %548 = vmatprep.subr.mxu0 0.0
    %549 = vmatpush1.msra.mxu0 0.0
    %550 = vmatprep.subr.mxu0 0.0
    %551 = vmatpush1.msra.mxu0 0.0
    %552 = vmatprep.subr.mxu0 0.0
    %553 = vmatpush1.msra.mxu0 0.0
    %554 = vmatprep.mubr.f32.mxu0 0.0
    %555 = vmatmul.mubr.f32.gmra.mrb[0].mxu0 0.0
    %v556 = vpop.f32.mrb[0].mxu0
    %v557 = vadd.f32 0.0, %v556
    %v558 = vpop.f32.mrb[0].mxu0
    %v559 = vadd.f32 0.0, %v558
    %560 = vdwg.mxu0
    %561 = vmatprep.subr.mxu0 %v429
    %562 = vmatpush1.msra.mxu0 %v428
    %563 = vmatprep.subr.mxu0 %v433
    %564 = vmatpush1.msra.mxu0 %v432
    %565 = vmatprep.subr.mxu0 %v437
    %566 = vmatpush1.msra.mxu0 %v436
    %567 = vmatprep.subr.mxu0 %v441
    %568 = vmatpush1.msra.mxu0 %v440
    %569 = vmatprep.subr.mxu0 %v445
    %570 = vmatpush1.msra.mxu0 %v444
    %571 = vmatprep.subr.mxu0 %v449
    %572 = vmatpush1.msra.mxu0 %v448
    %573 = vmatprep.subr.mxu0 %v453
    %574 = vmatpush1.msra.mxu0 %v452
    %575 = vmatprep.subr.mxu0 %v457
    %576 = vmatpush1.msra.mxu0 %v456
    %577 = vmatprep.subr.mxu0 %v461
    %578 = vmatpush1.msra.mxu0 %v460
    %579 = vmatprep.subr.mxu0 %v465
    %580 = vmatpush1.msra.mxu0 %v464
    %581 = vmatprep.subr.mxu0 %v469
    %582 = vmatpush1.msra.mxu0 %v468
    %583 = vmatprep.subr.mxu0 %v473
    %584 = vmatpush1.msra.mxu0 %v472
    %585 = vmatprep.subr.mxu0 %v477
    %586 = vmatpush1.msra.mxu0 %v476
    %587 = vmatprep.subr.mxu0 %v481
    %588 = vmatpush1.msra.mxu0 %v480
    %589 = vmatprep.subr.mxu0 %v485
    %590 = vmatpush1.msra.mxu0 %v484
    %591 = vmatprep.subr.mxu0 %v489
    %592 = vmatpush1.msra.mxu0 %v488
    %593 = vmatprep.subr.mxu0 0.0
    %594 = vmatpush1.msra.mxu0 0.0
    %595 = vmatprep.subr.mxu0 0.0
    %596 = vmatpush1.msra.mxu0 0.0
    %597 = vmatprep.subr.mxu0 0.0
    %598 = vmatpush1.msra.mxu0 0.0
    %599 = vmatprep.subr.mxu0 0.0
    %600 = vmatpush1.msra.mxu0 0.0
    %601 = vmatprep.subr.mxu0 0.0
    %602 = vmatpush1.msra.mxu0 0.0
    %603 = vmatprep.subr.mxu0 0.0
    %604 = vmatpush1.msra.mxu0 0.0
    %605 = vmatprep.subr.mxu0 0.0
    %606 = vmatpush1.msra.mxu0 0.0
    %607 = vmatprep.subr.mxu0 0.0
    %608 = vmatpush1.msra.mxu0 0.0
    %609 = vmatprep.subr.mxu0 0.0
    %610 = vmatpush1.msra.mxu0 0.0
    %611 = vmatprep.subr.mxu0 0.0
    %612 = vmatpush1.msra.mxu0 0.0
    %613 = vmatprep.subr.mxu0 0.0
    %614 = vmatpush1.msra.mxu0 0.0
    %615 = vmatprep.subr.mxu0 0.0
    %616 = vmatpush1.msra.mxu0 0.0
    %617 = vmatprep.subr.mxu0 0.0
    %618 = vmatpush1.msra.mxu0 0.0
    %619 = vmatprep.subr.mxu0 0.0
    %620 = vmatpush1.msra.mxu0 0.0
    %621 = vmatprep.subr.mxu0 0.0
    %622 = vmatpush1.msra.mxu0 0.0
    %623 = vmatprep.subr.mxu0 0.0
    %624 = vmatpush1.msra.mxu0 0.0
    %625 = vmatprep.mubr.f32.mxu0 0.0
    %626 = vmatmul.mubr.f32.gmra.mrb[0].mxu0 0.0
    %v627 = vpop.f32.mrb[0].mxu0
    %v628 = vadd.f32 0.0, %v627
    %v629 = vpop.f32.mrb[0].mxu0
    %v630 = vadd.f32 0.0, %v629
    %631 = vdwg.mxu0
    %v632 = vadd.f32 %v422, %v557
    %v633 = vadd.f32 %v423, %v559
    %v634 = vadd.f32 %v424, %v628
    %v635 = vadd.f32 %v425, %v630
    %v636 = vxor.u32 %v632, 2147483648
    %v637 = vxor.u32 %v633, 2147483648
    %v638 = vxor.u32 %v634, 2147483648
    %v639 = vmul.f32 %v636, 1.442695
    %v640 = vpow.pop %v639
    %v641 = vmul.f32 %v637, 1.442695
    %v642 = vpow.pop %v641
    %v643 = vmul.f32 %v638, 1.442695
    %v644 = vpow.pop %v643
    %v645 = vadd.f32 %v640, 1.0
    %v646 = vadd.f32 %v642, 1.0
    %v647 = vadd.f32 %v644, 1.0
    %v648 = vrcp.pop %v645
    %v649 = vmul.f32 1.0, %v648
    %v650 = vrcp.pop %v646
    %v651 = vmul.f32 1.0, %v650
    %v652 = vrcp.pop %v647
    %v653 = vmul.f32 1.0, %v652
    %v654 = vtanh.pop %v635
    %v655 = vmul.f32 %v651, 0.0
    %v656 = vmul.f32 %v649, %v654
    %v657 = vadd.f32 %v655, %v656
    %v658 = vtanh.pop %v657
    %v659 = vmul.f32 %v653, %v658
    %vm660 = vcmp.eq.s32.totalorder %v418, 0
    %v661 = vsel %vm660, %v659, 0.0
    %s662 = smul.u32 1, 4
    %s663 = smul.addr %s662, 8
    %s664 = scalar_lea.vmem [#allocation2], %s663
    %v665 = vld [vmem:[%s664] sm:$0xff]
    %v666 = vld [vmem:[%s664 + $0x8] sm:$0xff]
    %v667 = vld [vmem:[%s664 + $0x10] sm:$0xff]
    %v668 = vld [vmem:[%s664 + $0x18] sm:$0xff]
    %669 = vmatprep.subr.mxu0 %v427
    %670 = vmatpush1.msra.mxu0 %v426
    %671 = vmatprep.subr.mxu0 %v431
    %672 = vmatpush1.msra.mxu0 %v430
    %673 = vmatprep.subr.mxu0 %v435
    %674 = vmatpush1.msra.mxu0 %v434
    %675 = vmatprep.subr.mxu0 %v439
    %676 = vmatpush1.msra.mxu0 %v438
    %677 = vmatprep.subr.mxu0 %v443
    %678 = vmatpush1.msra.mxu0 %v442
    %679 = vmatprep.subr.mxu0 %v447
    %680 = vmatpush1.msra.mxu0 %v446
    %681 = vmatprep.subr.mxu0 %v451
    %682 = vmatpush1.msra.mxu0 %v450
    %683 = vmatprep.subr.mxu0 %v455
    %684 = vmatpush1.msra.mxu0 %v454
    %685 = vmatprep.subr.mxu0 %v459
    %686 = vmatpush1.msra.mxu0 %v458
    %687 = vmatprep.subr.mxu0 %v463
    %688 = vmatpush1.msra.mxu0 %v462
    %689 = vmatprep.subr.mxu0 %v467
    %690 = vmatpush1.msra.mxu0 %v466
    %691 = vmatprep.subr.mxu0 %v471
    %692 = vmatpush1.msra.mxu0 %v470
    %693 = vmatprep.subr.mxu0 %v475
    %694 = vmatpush1.msra.mxu0 %v474
    %695 = vmatprep.subr.mxu0 %v479
    %696 = vmatpush1.msra.mxu0 %v478
    %697 = vmatprep.subr.mxu0 %v483
    %698 = vmatpush1.msra.mxu0 %v482
    %699 = vmatprep.subr.mxu0 %v487
    %700 = vmatpush1.msra.mxu0 %v486
    %701 = vmatprep.subr.mxu0 0.0
    %702 = vmatpush1.msra.mxu0 0.0
    %703 = vmatprep.subr.mxu0 0.0
    %704 = vmatpush1.msra.mxu0 0.0
    %705 = vmatprep.subr.mxu0 0.0
    %706 = vmatpush1.msra.mxu0 0.0
    %707 = vmatprep.subr.mxu0 0.0
    %708 = vmatpush1.msra.mxu0 0.0
    %709 = vmatprep.subr.mxu0 0.0
    %710 = vmatpush1.msra.mxu0 0.0
    %711 = vmatprep.subr.mxu0 0.0
    %712 = vmatpush1.msra.mxu0 0.0
    %713 = vmatprep.subr.mxu0 0.0
    %714 = vmatpush1.msra.mxu0 0.0
    %715 = vmatprep.subr.mxu0 0.0
    %716 = vmatpush1.msra.mxu0 0.0
    %717 = vmatprep.subr.mxu0 0.0
    %718 = vmatpush1.msra.mxu0 0.0
    %719 = vmatprep.subr.mxu0 0.0
    %720 = vmatpush1.msra.mxu0 0.0
    %721 = vmatprep.subr.mxu0 0.0
    %722 = vmatpush1.msra.mxu0 0.0
    %723 = vmatprep.subr.mxu0 0.0
    %724 = vmatpush1.msra.mxu0 0.0
    %725 = vmatprep.subr.mxu0 0.0
    %726 = vmatpush1.msra.mxu0 0.0
    %727 = vmatprep.subr.mxu0 0.0
    %728 = vmatpush1.msra.mxu0 0.0
    %729 = vmatprep.subr.mxu0 0.0
    %730 = vmatpush1.msra.mxu0 0.0
    %731 = vmatprep.subr.mxu0 0.0
    %732 = vmatpush1.msra.mxu0 0.0
    %733 = vmatprep.mubr.f32.mxu0 0.0
    %734 = vmatmul.mubr.f32.gmra.mrb[0].mxu0 %v659
    %v735 = vpop.f32.mrb[0].mxu0
    %v736 = vadd.f32 0.0, %v735
    %v737 = vpop.f32.mrb[0].mxu0
    %v738 = vadd.f32 0.0, %v737
    %739 = vdwg.mxu0
    %740 = vmatprep.subr.mxu0 %v429
    %741 = vmatpush1.msra.mxu0 %v428
    %742 = vmatprep.subr.mxu0 %v433
    %743 = vmatpush1.msra.mxu0 %v432
    %744 = vmatprep.subr.mxu0 %v437
    %745 = vmatpush1.msra.mxu0 %v436
    %746 = vmatprep.subr.mxu0 %v441
    %747 = vmatpush1.msra.mxu0 %v440
    %748 = vmatprep.subr.mxu0 %v445
    %749 = vmatpush1.msra.mxu0 %v444
    %750 = vmatprep.subr.mxu0 %v449
    %751 = vmatpush1.msra.mxu0 %v448
    %752 = vmatprep.subr.mxu0 %v453
    %753 = vmatpush1.msra.mxu0 %v452
    %754 = vmatprep.subr.mxu0 %v457
    %755 = vmatpush1.msra.mxu0 %v456
    %756 = vmatprep.subr.mxu0 %v461
    %757 = vmatpush1.msra.mxu0 %v460
    %758 = vmatprep.subr.mxu0 %v465
    %759 = vmatpush1.msra.mxu0 %v464
    %760 = vmatprep.subr.mxu0 %v469
    %761 = vmatpush1.msra.mxu0 %v468
    %762 = vmatprep.subr.mxu0 %v473
    %763 = vmatpush1.msra.mxu0 %v472
    %764 = vmatprep.subr.mxu0 %v477
    %765 = vmatpush1.msra.mxu0 %v476
    %766 = vmatprep.subr.mxu0 %v481
    %767 = vmatpush1.msra.mxu0 %v480
    %768 = vmatprep.subr.mxu0 %v485
    %769 = vmatpush1.msra.mxu0 %v484
    %770 = vmatprep.subr.mxu0 %v489
    %771 = vmatpush1.msra.mxu0 %v488
    %772 = vmatprep.subr.mxu0 0.0
    %773 = vmatpush1.msra.mxu0 0.0
    %774 = vmatprep.subr.mxu0 0.0
    %775 = vmatpush1.msra.mxu0 0.0
    %776 = vmatprep.subr.mxu0 0.0
    %777 = vmatpush1.msra.mxu0 0.0
    %778 = vmatprep.subr.mxu0 0.0
    %779 = vmatpush1.msra.mxu0 0.0
    %780 = vmatprep.subr.mxu0 0.0
    %781 = vmatpush1.msra.mxu0 0.0
    %782 = vmatprep.subr.mxu0 0.0
    %783 = vmatpush1.msra.mxu0 0.0
    %784 = vmatprep.subr.mxu0 0.0
    %785 = vmatpush1.msra.mxu0 0.0
    %786 = vmatprep.subr.mxu0 0.0
    %787 = vmatpush1.msra.mxu0 0.0
    %788 = vmatprep.subr.mxu0 0.0
    %789 = vmatpush1.msra.mxu0 0.0
    %790 = vmatprep.subr.mxu0 0.0
    %791 = vmatpush1.msra.mxu0 0.0
    %792 = vmatprep.subr.mxu0 0.0
    %793 = vmatpush1.msra.mxu0 0.0
    %794 = vmatprep.subr.mxu0 0.0
    %795 = vmatpush1.msra.mxu0 0.0
    %796 = vmatprep.subr.mxu0 0.0
    %797 = vmatpush1.msra.mxu0 0.0
    %798 = vmatprep.subr.mxu0 0.0
    %799 = vmatpush1.msra.mxu0 0.0
    %800 = vmatprep.subr.mxu0 0.0
    %801 = vmatpush1.msra.mxu0 0.0
    %802 = vmatprep.subr.mxu0 0.0
    %803 = vmatpush1.msra.mxu0 0.0
    %804 = vmatprep.mubr.f32.mxu0 0.0
    %805 = vmatmul.mubr.f32.gmra.mrb[0].mxu0 %v659
    %v806 = vpop.f32.mrb[0].mxu0
    %v807 = vadd.f32 0.0, %v806
    %v808 = vpop.f32.mrb[0].mxu0
    %v809 = vadd.f32 0.0, %v808
    %810 = vdwg.mxu0
    %v811 = vadd.f32 %v665, %v736
    %v812 = vadd.f32 %v666, %v738
    %v813 = vadd.f32 %v667, %v807
    %v814 = vadd.f32 %v668, %v809
    %v815 = vxor.u32 %v811, 2147483648
    %v816 = vxor.u32 %v812, 2147483648
    %v817 = vxor.u32 %v813, 2147483648
    %v818 = vmul.f32 %v815, 1.442695
    %v819 = vpow.pop %v818
    %v820 = vmul.f32 %v816, 1.442695
    %v821 = vpow.pop %v820
    %v822 = vmul.f32 %v817, 1.442695
    %v823 = vpow.pop %v822
    %v824 = vadd.f32 %v819, 1.0
    %v825 = vadd.f32 %v821, 1.0
    %v826 = vadd.f32 %v823, 1.0
    %v827 = vrcp.pop %v824
    %v828 = vmul.f32 1.0, %v827
    %v829 = vrcp.pop %v825
    %v830 = vmul.f32 1.0, %v829
    %v831 = vrcp.pop %v826
    %v832 = vmul.f32 1.0, %v831
    %v833 = vtanh.pop %v814
    %v834 = vmul.f32 %v830, %v657
    %v835 = vmul.f32 %v828, %v833
    %v836 = vadd.f32 %v834, %v835
    %v837 = vtanh.pop %v836
    %v838 = vmul.f32 %v832, %v837
    %vm839 = vcmp.eq.s32.totalorder %v418, 1
    %v840 = vsel %vm839, %v838, %v661
    %s841 = smul.u32 2, 4
    %s842 = smul.addr %s841, 8
    %s843 = scalar_lea.vmem [#allocation2], %s842
    %v844 = vld [vmem:[%s843] sm:$0xff]
    %v845 = vld [vmem:[%s843 + $0x8] sm:$0xff]
    %v846 = vld [vmem:[%s843 + $0x10] sm:$0xff]
    %v847 = vld [vmem:[%s843 + $0x18] sm:$0xff]
    %848 = vmatprep.subr.mxu0 %v427
    %849 = vmatpush1.msra.mxu0 %v426
    %850 = vmatprep.subr.mxu0 %v431
    %851 = vmatpush1.msra.mxu0 %v430
    %852 = vmatprep.subr.mxu0 %v435
    %853 = vmatpush1.msra.mxu0 %v434
    %854 = vmatprep.subr.mxu0 %v439
    %855 = vmatpush1.msra.mxu0 %v438
    %856 = vmatprep.subr.mxu0 %v443
    %857 = vmatpush1.msra.mxu0 %v442
    %858 = vmatprep.subr.mxu0 %v447
    %859 = vmatpush1.msra.mxu0 %v446
    %860 = vmatprep.subr.mxu0 %v451
    %861 = vmatpush1.msra.mxu0 %v450
    %862 = vmatprep.subr.mxu0 %v455
    %863 = vmatpush1.msra.mxu0 %v454
    %864 = vmatprep.subr.mxu0 %v459
    %865 = vmatpush1.msra.mxu0 %v458
    %866 = vmatprep.subr.mxu0 %v463
    %867 = vmatpush1.msra.mxu0 %v462
    %868 = vmatprep.subr.mxu0 %v467
    %869 = vmatpush1.msra.mxu0 %v466
    %870 = vmatprep.subr.mxu0 %v471
    %871 = vmatpush1.msra.mxu0 %v470
    %872 = vmatprep.subr.mxu0 %v475
    %873 = vmatpush1.msra.mxu0 %v474
    %874 = vmatprep.subr.mxu0 %v479
    %875 = vmatpush1.msra.mxu0 %v478
    %876 = vmatprep.subr.mxu0 %v483
    %877 = vmatpush1.msra.mxu0 %v482
    %878 = vmatprep.subr.mxu0 %v487
    %879 = vmatpush1.msra.mxu0 %v486
    %880 = vmatprep.subr.mxu0 0.0
    %881 = vmatpush1.msra.mxu0 0.0
    %882 = vmatprep.subr.mxu0 0.0
    %883 = vmatpush1.msra.mxu0 0.0
    %884 = vmatprep.subr.mxu0 0.0
    %885 = vmatpush1.msra.mxu0 0.0
    %886 = vmatprep.subr.mxu0 0.0
    %887 = vmatpush1.msra.mxu0 0.0
    %888 = vmatprep.subr.mxu0 0.0
    %889 = vmatpush1.msra.mxu0 0.0
    %890 = vmatprep.subr.mxu0 0.0
    %891 = vmatpush1.msra.mxu0 0.0
    %892 = vmatprep.subr.mxu0 0.0
    %893 = vmatpush1.msra.mxu0 0.0
    %894 = vmatprep.subr.mxu0 0.0
    %895 = vmatpush1.msra.mxu0 0.0
    %896 = vmatprep.subr.mxu0 0.0
    %897 = vmatpush1.msra.mxu0 0.0
    %898 = vmatprep.subr.mxu0 0.0
    %899 = vmatpush1.msra.mxu0 0.0
    %900 = vmatprep.subr.mxu0 0.0
    %901 = vmatpush1.msra.mxu0 0.0
    %902 = vmatprep.subr.mxu0 0.0
    %903 = vmatpush1.msra.mxu0 0.0
    %904 = vmatprep.subr.mxu0 0.0
    %905 = vmatpush1.msra.mxu0 0.0
    %906 = vmatprep.subr.mxu0 0.0
    %907 = vmatpush1.msra.mxu0 0.0
    %908 = vmatprep.subr.mxu0 0.0
    %909 = vmatpush1.msra.mxu0 0.0
    %910 = vmatprep.subr.mxu0 0.0
    %911 = vmatpush1.msra.mxu0 0.0
    %912 = vmatprep.mubr.f32.mxu0 0.0
    %913 = vmatmul.mubr.f32.gmra.mrb[0].mxu0 %v838
    %v914 = vpop.f32.mrb[0].mxu0
    %v915 = vadd.f32 0.0, %v914
    %v916 = vpop.f32.mrb[0].mxu0
    %v917 = vadd.f32 0.0, %v916
    %918 = vdwg.mxu0
    %919 = vmatprep.subr.mxu0 %v429
    %920 = vmatpush1.msra.mxu0 %v428
    %921 = vmatprep.subr.mxu0 %v433
    %922 = vmatpush1.msra.mxu0 %v432
    %923 = vmatprep.subr.mxu0 %v437
    %924 = vmatpush1.msra.mxu0 %v436
    %925 = vmatprep.subr.mxu0 %v441
    %926 = vmatpush1.msra.mxu0 %v440
    %927 = vmatprep.subr.mxu0 %v445
    %928 = vmatpush1.msra.mxu0 %v444
    %929 = vmatprep.subr.mxu0 %v449
    %930 = vmatpush1.msra.mxu0 %v448
    %931 = vmatprep.subr.mxu0 %v453
    %932 = vmatpush1.msra.mxu0 %v452
    %933 = vmatprep.subr.mxu0 %v457
    %934 = vmatpush1.msra.mxu0 %v456
    %935 = vmatprep.subr.mxu0 %v461
    %936 = vmatpush1.msra.mxu0 %v460
    %937 = vmatprep.subr.mxu0 %v465
    %938 = vmatpush1.msra.mxu0 %v464
    %939 = vmatprep.subr.mxu0 %v469
    %940 = vmatpush1.msra.mxu0 %v468
    %941 = vmatprep.subr.mxu0 %v473
    %942 = vmatpush1.msra.mxu0 %v472
    %943 = vmatprep.subr.mxu0 %v477
    %944 = vmatpush1.msra.mxu0 %v476
    %945 = vmatprep.subr.mxu0 %v481
    %946 = vmatpush1.msra.mxu0 %v480
    %947 = vmatprep.subr.mxu0 %v485
    %948 = vmatpush1.msra.mxu0 %v484
    %949 = vmatprep.subr.mxu0 %v489
    %950 = vmatpush1.msra.mxu0 %v488
    %951 = vmatprep.subr.mxu0 0.0
    %952 = vmatpush1.msra.mxu0 0.0
    %953 = vmatprep.subr.mxu0 0.0
    %954 = vmatpush1.msra.mxu0 0.0
    %955 = vmatprep.subr.mxu0 0.0
    %956 = vmatpush1.msra.mxu0 0.0
    %957 = vmatprep.subr.mxu0 0.0
    %958 = vmatpush1.msra.mxu0 0.0
    %959 = vmatprep.subr.mxu0 0.0
    %960 = vmatpush1.msra.mxu0 0.0
    %961 = vmatprep.subr.mxu0 0.0
    %962 = vmatpush1.msra.mxu0 0.0
    %963 = vmatprep.subr.mxu0 0.0
    %964 = vmatpush1.msra.mxu0 0.0
    %965 = vmatprep.subr.mxu0 0.0
    %966 = vmatpush1.msra.mxu0 0.0
    %967 = vmatprep.subr.mxu0 0.0
    %968 = vmatpush1.msra.mxu0 0.0
    %969 = vmatprep.subr.mxu0 0.0
    %970 = vmatpush1.msra.mxu0 0.0
    %971 = vmatprep.subr.mxu0 0.0
    %972 = vmatpush1.msra.mxu0 0.0
    %973 = vmatprep.subr.mxu0 0.0
    %974 = vmatpush1.msra.mxu0 0.0
    %975 = vmatprep.subr.mxu0 0.0
    %976 = vmatpush1.msra.mxu0 0.0
    %977 = vmatprep.subr.mxu0 0.0
    %978 = vmatpush1.msra.mxu0 0.0
    %979 = vmatprep.subr.mxu0 0.0
    %980 = vmatpush1.msra.mxu0 0.0
    %981 = vmatprep.subr.mxu0 0.0
    %982 = vmatpush1.msra.mxu0 0.0
    %983 = vmatprep.mubr.f32.mxu0 0.0
    %984 = vmatmul.mubr.f32.gmra.mrb[0].mxu0 %v838
    %v985 = vpop.f32.mrb[0].mxu0
    %v986 = vadd.f32 0.0, %v985
    %v987 = vpop.f32.mrb[0].mxu0
    %v988 = vadd.f32 0.0, %v987
    %989 = vdwg.mxu0
    %v990 = vadd.f32 %v844, %v915
    %v991 = vadd.f32 %v845, %v917
    %v992 = vadd.f32 %v846, %v986
    %v993 = vadd.f32 %v847, %v988
    %v994 = vxor.u32 %v990, 2147483648
    %v995 = vxor.u32 %v991, 2147483648
    %v996 = vxor.u32 %v992, 2147483648
    %v997 = vmul.f32 %v994, 1.442695
    %v998 = vpow.pop %v997
    %v999 = vmul.f32 %v995, 1.442695
    %v1000 = vpow.pop %v999
    %v1001 = vmul.f32 %v996, 1.442695
    %v1002 = vpow.pop %v1001
    %v1003 = vadd.f32 %v998, 1.0
    %v1004 = vadd.f32 %v1000, 1.0
    %v1005 = vadd.f32 %v1002, 1.0
    %v1006 = vrcp.pop %v1003
    %v1007 = vmul.f32 1.0, %v1006
    %v1008 = vrcp.pop %v1004
    %v1009 = vmul.f32 1.0, %v1008
    %v1010 = vrcp.pop %v1005
    %v1011 = vmul.f32 1.0, %v1010
    %v1012 = vtanh.pop %v993
    %v1013 = vmul.f32 %v1009, %v836
    %v1014 = vmul.f32 %v1007, %v1012
    %v1015 = vadd.f32 %v1013, %v1014
    %v1016 = vtanh.pop %v1015
    %v1017 = vmul.f32 %v1011, %v1016
    %vm1018 = vcmp.eq.s32.totalorder %v418, 2
    %v1019 = vsel %vm1018, %v1017, %v840
    %s1020 = smul.u32 3, 4
    %s1021 = smul.addr %s1020, 8
    %s1022 = scalar_lea.vmem [#allocation2], %s1021
    %v1023 = vld [vmem:[%s1022] sm:$0xff]
    %v1024 = vld [vmem:[%s1022 + $0x8] sm:$0xff]
    %v1025 = vld [vmem:[%s1022 + $0x10] sm:$0xff]
    %v1026 = vld [vmem:[%s1022 + $0x18] sm:$0xff]
    %1027 = vmatprep.subr.mxu0 %v427
    %1028 = vmatpush1.msra.mxu0 %v426
    %1029 = vmatprep.subr.mxu0 %v431
    %1030 = vmatpush1.msra.mxu0 %v430
    %1031 = vmatprep.subr.mxu0 %v435
    %1032 = vmatpush1.msra.mxu0 %v434
    %1033 = vmatprep.subr.mxu0 %v439
    %1034 = vmatpush1.msra.mxu0 %v438
    %1035 = vmatprep.subr.mxu0 %v443
    %1036 = vmatpush1.msra.mxu0 %v442
    %1037 = vmatprep.subr.mxu0 %v447
    %1038 = vmatpush1.msra.mxu0 %v446
    %1039 = vmatprep.subr.mxu0 %v451
    %1040 = vmatpush1.msra.mxu0 %v450
    %1041 = vmatprep.subr.mxu0 %v455
    %1042 = vmatpush1.msra.mxu0 %v454
    %1043 = vmatprep.subr.mxu0 %v459
    %1044 = vmatpush1.msra.mxu0 %v458
    %1045 = vmatprep.subr.mxu0 %v463
    %1046 = vmatpush1.msra.mxu0 %v462
    %1047 = vmatprep.subr.mxu0 %v467
    %1048 = vmatpush1.msra.mxu0 %v466
    %1049 = vmatprep.subr.mxu0 %v471
    %1050 = vmatpush1.msra.mxu0 %v470
    %1051 = vmatprep.subr.mxu0 %v475
    %1052 = vmatpush1.msra.mxu0 %v474
    %1053 = vmatprep.subr.mxu0 %v479
    %1054 = vmatpush1.msra.mxu0 %v478
    %1055 = vmatprep.subr.mxu0 %v483
    %1056 = vmatpush1.msra.mxu0 %v482
    %1057 = vmatprep.subr.mxu0 %v487
    %1058 = vmatpush1.msra.mxu0 %v486
    %1059 = vmatprep.subr.mxu0 0.0
    %1060 = vmatpush1.msra.mxu0 0.0
    %1061 = vmatprep.subr.mxu0 0.0
    %1062 = vmatpush1.msra.mxu0 0.0
    %1063 = vmatprep.subr.mxu0 0.0
    %1064 = vmatpush1.msra.mxu0 0.0
    %1065 = vmatprep.subr.mxu0 0.0
    %1066 = vmatpush1.msra.mxu0 0.0
    %1067 = vmatprep.subr.mxu0 0.0
    %1068 = vmatpush1.msra.mxu0 0.0
    %1069 = vmatprep.subr.mxu0 0.0
    %1070 = vmatpush1.msra.mxu0 0.0
    %1071 = vmatprep.subr.mxu0 0.0
    %1072 = vmatpush1.msra.mxu0 0.0
    %1073 = vmatprep.subr.mxu0 0.0
    %1074 = vmatpush1.msra.mxu0 0.0
    %1075 = vmatprep.subr.mxu0 0.0
    %1076 = vmatpush1.msra.mxu0 0.0
    %1077 = vmatprep.subr.mxu0 0.0
    %1078 = vmatpush1.msra.mxu0 0.0
    %1079 = vmatprep.subr.mxu0 0.0
    %1080 = vmatpush1.msra.mxu0 0.0
    %1081 = vmatprep.subr.mxu0 0.0
    %1082 = vmatpush1.msra.mxu0 0.0
    %1083 = vmatprep.subr.mxu0 0.0
    %1084 = vmatpush1.msra.mxu0 0.0
    %1085 = vmatprep.subr.mxu0 0.0
    %1086 = vmatpush1.msra.mxu0 0.0
    %1087 = vmatprep.subr.mxu0 0.0
    %1088 = vmatpush1.msra.mxu0 0.0
    %1089 = vmatprep.subr.mxu0 0.0
    %1090 = vmatpush1.msra.mxu0 0.0
    %1091 = vmatprep.mubr.f32.mxu0 0.0
    %1092 = vmatmul.mubr.f32.gmra.mrb[0].mxu0 %v1017
    %v1093 = vpop.f32.mrb[0].mxu0
    %v1094 = vadd.f32 0.0, %v1093
    %v1095 = vpop.f32.mrb[0].mxu0
    %v1096 = vadd.f32 0.0, %v1095
    %1097 = vdwg.mxu0
    %1098 = vmatprep.subr.mxu0 %v429
    %1099 = vmatpush1.msra.mxu0 %v428
    %1100 = vmatprep.subr.mxu0 %v433
    %1101 = vmatpush1.msra.mxu0 %v432
    %1102 = vmatprep.subr.mxu0 %v437
    %1103 = vmatpush1.msra.mxu0 %v436
    %1104 = vmatprep.subr.mxu0 %v441
    %1105 = vmatpush1.msra.mxu0 %v440
    %1106 = vmatprep.subr.mxu0 %v445
    %1107 = vmatpush1.msra.mxu0 %v444
    %1108 = vmatprep.subr.mxu0 %v449
    %1109 = vmatpush1.msra.mxu0 %v448
    %1110 = vmatprep.subr.mxu0 %v453
    %1111 = vmatpush1.msra.mxu0 %v452
    %1112 = vmatprep.subr.mxu0 %v457
    %1113 = vmatpush1.msra.mxu0 %v456
    %1114 = vmatprep.subr.mxu0 %v461
    %1115 = vmatpush1.msra.mxu0 %v460
    %1116 = vmatprep.subr.mxu0 %v465
    %1117 = vmatpush1.msra.mxu0 %v464
    %1118 = vmatprep.subr.mxu0 %v469
    %1119 = vmatpush1.msra.mxu0 %v468
    %1120 = vmatprep.subr.mxu0 %v473
    %1121 = vmatpush1.msra.mxu0 %v472
    %1122 = vmatprep.subr.mxu0 %v477
    %1123 = vmatpush1.msra.mxu0 %v476
    %1124 = vmatprep.subr.mxu0 %v481
    %1125 = vmatpush1.msra.mxu0 %v480
    %1126 = vmatprep.subr.mxu0 %v485
    %1127 = vmatpush1.msra.mxu0 %v484
    %1128 = vmatprep.subr.mxu0 %v489
    %1129 = vmatpush1.msra.mxu0 %v488
    %1130 = vmatprep.subr.mxu0 0.0
    %1131 = vmatpush1.msra.mxu0 0.0
    %1132 = vmatprep.subr.mxu0 0.0
    %1133 = vmatpush1.msra.mxu0 0.0
    %1134 = vmatprep.subr.mxu0 0.0
    %1135 = vmatpush1.msra.mxu0 0.0
    %1136 = vmatprep.subr.mxu0 0.0
    %1137 = vmatpush1.msra.mxu0 0.0
    %1138 = vmatprep.subr.mxu0 0.0
    %1139 = vmatpush1.msra.mxu0 0.0
    %1140 = vmatprep.subr.mxu0 0.0
    %1141 = vmatpush1.msra.mxu0 0.0
    %1142 = vmatprep.subr.mxu0 0.0
    %1143 = vmatpush1.msra.mxu0 0.0
    %1144 = vmatprep.subr.mxu0 0.0
    %1145 = vmatpush1.msra.mxu0 0.0
    %1146 = vmatprep.subr.mxu0 0.0
    %1147 = vmatpush1.msra.mxu0 0.0
    %1148 = vmatprep.subr.mxu0 0.0
    %1149 = vmatpush1.msra.mxu0 0.0
    %1150 = vmatprep.subr.mxu0 0.0
    %1151 = vmatpush1.msra.mxu0 0.0
    %1152 = vmatprep.subr.mxu0 0.0
    %1153 = vmatpush1.msra.mxu0 0.0
    %1154 = vmatprep.subr.mxu0 0.0
    %1155 = vmatpush1.msra.mxu0 0.0
    %1156 = vmatprep.subr.mxu0 0.0
    %1157 = vmatpush1.msra.mxu0 0.0
    %1158 = vmatprep.subr.mxu0 0.0
    %1159 = vmatpush1.msra.mxu0 0.0
    %1160 = vmatprep.subr.mxu0 0.0
    %1161 = vmatpush1.msra.mxu0 0.0
    %1162 = vmatprep.mubr.f32.mxu0 0.0
    %1163 = vmatmul.mubr.f32.gmra.mrb[0].mxu0 %v1017
    %v1164 = vpop.f32.mrb[0].mxu0
    %v1165 = vadd.f32 0.0, %v1164
    %v1166 = vpop.f32.mrb[0].mxu0
    %v1167 = vadd.f32 0.0, %v1166
    %1168 = vdwg.mxu0
    %v1169 = vadd.f32 %v1023, %v1094
    %v1170 = vadd.f32 %v1024, %v1096
    %v1171 = vadd.f32 %v1025, %v1165
    %v1172 = vadd.f32 %v1026, %v1167
    %v1173 = vxor.u32 %v1169, 2147483648
    %v1174 = vxor.u32 %v1170, 2147483648
    %v1175 = vxor.u32 %v1171, 2147483648
    %v1176 = vmul.f32 %v1173, 1.442695
    %v1177 = vpow.pop %v1176
    %v1178 = vmul.f32 %v1174, 1.442695
    %v1179 = vpow.pop %v1178
    %v1180 = vmul.f32 %v1175, 1.442695
    %v1181 = vpow.pop %v1180
    %v1182 = vadd.f32 %v1177, 1.0
    %v1183 = vadd.f32 %v1179, 1.0
    %v1184 = vadd.f32 %v1181, 1.0
    %v1185 = vrcp.pop %v1182
    %v1186 = vmul.f32 1.0, %v1185
    %v1187 = vrcp.pop %v1183
    %v1188 = vmul.f32 1.0, %v1187
    %v1189 = vrcp.pop %v1184
    %v1190 = vmul.f32 1.0, %v1189
    %v1191 = vtanh.pop %v1172
    %v1192 = vmul.f32 %v1188, %v1015
    %v1193 = vmul.f32 %v1186, %v1191
    %v1194 = vadd.f32 %v1192, %v1193
    %v1195 = vtanh.pop %v1194
    %v1196 = vmul.f32 %v1190, %v1195
    %vm1197 = vcmp.eq.s32.totalorder %v418, 3
    %v1198 = vsel %vm1197, %v1196, %v1019
    %s1199 = smul.u32 4, 4
    %s1200 = smul.addr %s1199, 8
    %s1201 = scalar_lea.vmem [#allocation2], %s1200
    %v1202 = vld [vmem:[%s1201] sm:$0xff]
    %v1203 = vld [vmem:[%s1201 + $0x8] sm:$0xff]
    %v1204 = vld [vmem:[%s1201 + $0x10] sm:$0xff]
    %v1205 = vld [vmem:[%s1201 + $0x18] sm:$0xff]
    %1206 = vmatprep.subr.mxu0 %v427
    %1207 = vmatpush1.msra.mxu0 %v426
    %1208 = vmatprep.subr.mxu0 %v431
    %1209 = vmatpush1.msra.mxu0 %v430
    %1210 = vmatprep.subr.mxu0 %v435
    %1211 = vmatpush1.msra.mxu0 %v434
    %1212 = vmatprep.subr.mxu0 %v439
    %1213 = vmatpush1.msra.mxu0 %v438
    %1214 = vmatprep.subr.mxu0 %v443
    %1215 = vmatpush1.msra.mxu0 %v442
    %1216 = vmatprep.subr.mxu0 %v447
    %1217 = vmatpush1.msra.mxu0 %v446
    %1218 = vmatprep.subr.mxu0 %v451
    %1219 = vmatpush1.msra.mxu0 %v450
    %1220 = vmatprep.subr.mxu0 %v455
    %1221 = vmatpush1.msra.mxu0 %v454
    %1222 = vmatprep.subr.mxu0 %v459
    %1223 = vmatpush1.msra.mxu0 %v458
    %1224 = vmatprep.subr.mxu0 %v463
    %1225 = vmatpush1.msra.mxu0 %v462
    %1226 = vmatprep.subr.mxu0 %v467
    %1227 = vmatpush1.msra.mxu0 %v466
    %1228 = vmatprep.subr.mxu0 %v471
    %1229 = vmatpush1.msra.mxu0 %v470
    %1230 = vmatprep.subr.mxu0 %v475
    %1231 = vmatpush1.msra.mxu0 %v474
    %1232 = vmatprep.subr.mxu0 %v479
    %1233 = vmatpush1.msra.mxu0 %v478
    %1234 = vmatprep.subr.mxu0 %v483
    %1235 = vmatpush1.msra.mxu0 %v482
    %1236 = vmatprep.subr.mxu0 %v487
    %1237 = vmatpush1.msra.mxu0 %v486
    %1238 = vmatprep.subr.mxu0 0.0
    %1239 = vmatpush1.msra.mxu0 0.0
    %1240 = vmatprep.subr.mxu0 0.0
    %1241 = vmatpush1.msra.mxu0 0.0
    %1242 = vmatprep.subr.mxu0 0.0
    %1243 = vmatpush1.msra.mxu0 0.0
    %1244 = vmatprep.subr.mxu0 0.0
    %1245 = vmatpush1.msra.mxu0 0.0
    %1246 = vmatprep.subr.mxu0 0.0
    %1247 = vmatpush1.msra.mxu0 0.0
    %1248 = vmatprep.subr.mxu0 0.0
    %1249 = vmatpush1.msra.mxu0 0.0
    %1250 = vmatprep.subr.mxu0 0.0
    %1251 = vmatpush1.msra.mxu0 0.0
    %1252 = vmatprep.subr.mxu0 0.0
    %1253 = vmatpush1.msra.mxu0 0.0
    %1254 = vmatprep.subr.mxu0 0.0
    %1255 = vmatpush1.msra.mxu0 0.0
    %1256 = vmatprep.subr.mxu0 0.0
    %1257 = vmatpush1.msra.mxu0 0.0
    %1258 = vmatprep.subr.mxu0 0.0
    %1259 = vmatpush1.msra.mxu0 0.0
    %1260 = vmatprep.subr.mxu0 0.0
    %1261 = vmatpush1.msra.mxu0 0.0
    %1262 = vmatprep.subr.mxu0 0.0
    %1263 = vmatpush1.msra.mxu0 0.0
    %1264 = vmatprep.subr.mxu0 0.0
    %1265 = vmatpush1.msra.mxu0 0.0
    %1266 = vmatprep.subr.mxu0 0.0
    %1267 = vmatpush1.msra.mxu0 0.0
    %1268 = vmatprep.subr.mxu0 0.0
    %1269 = vmatpush1.msra.mxu0 0.0
    %1270 = vmatprep.mubr.f32.mxu0 0.0
    %1271 = vmatmul.mubr.f32.gmra.mrb[0].mxu0 %v1196
    %v1272 = vpop.f32.mrb[0].mxu0
    %v1273 = vadd.f32 0.0, %v1272
    %v1274 = vpop.f32.mrb[0].mxu0
    %v1275 = vadd.f32 0.0, %v1274
    %1276 = vdwg.mxu0
    %1277 = vmatprep.subr.mxu0 %v429
    %1278 = vmatpush1.msra.mxu0 %v428
    %1279 = vmatprep.subr.mxu0 %v433
    %1280 = vmatpush1.msra.mxu0 %v432
    %1281 = vmatprep.subr.mxu0 %v437
    %1282 = vmatpush1.msra.mxu0 %v436
    %1283 = vmatprep.subr.mxu0 %v441
    %1284 = vmatpush1.msra.mxu0 %v440
    %1285 = vmatprep.subr.mxu0 %v445
    %1286 = vmatpush1.msra.mxu0 %v444
    %1287 = vmatprep.subr.mxu0 %v449
    %1288 = vmatpush1.msra.mxu0 %v448
    %1289 = vmatprep.subr.mxu0 %v453
    %1290 = vmatpush1.msra.mxu0 %v452
    %1291 = vmatprep.subr.mxu0 %v457
    %1292 = vmatpush1.msra.mxu0 %v456
    %1293 = vmatprep.subr.mxu0 %v461
    %1294 = vmatpush1.msra.mxu0 %v460
    %1295 = vmatprep.subr.mxu0 %v465
    %1296 = vmatpush1.msra.mxu0 %v464
    %1297 = vmatprep.subr.mxu0 %v469
    %1298 = vmatpush1.msra.mxu0 %v468
    %1299 = vmatprep.subr.mxu0 %v473
    %1300 = vmatpush1.msra.mxu0 %v472
    %1301 = vmatprep.subr.mxu0 %v477
    %1302 = vmatpush1.msra.mxu0 %v476
    %1303 = vmatprep.subr.mxu0 %v481
    %1304 = vmatpush1.msra.mxu0 %v480
    %1305 = vmatprep.subr.mxu0 %v485
    %1306 = vmatpush1.msra.mxu0 %v484
    %1307 = vmatprep.subr.mxu0 %v489
    %1308 = vmatpush1.msra.mxu0 %v488
    %1309 = vmatprep.subr.mxu0 0.0
    %1310 = vmatpush1.msra.mxu0 0.0
    %1311 = vmatprep.subr.mxu0 0.0
    %1312 = vmatpush1.msra.mxu0 0.0
    %1313 = vmatprep.subr.mxu0 0.0
    %1314 = vmatpush1.msra.mxu0 0.0
    %1315 = vmatprep.subr.mxu0 0.0
    %1316 = vmatpush1.msra.mxu0 0.0
    %1317 = vmatprep.subr.mxu0 0.0
    %1318 = vmatpush1.msra.mxu0 0.0
    %1319 = vmatprep.subr.mxu0 0.0
    %1320 = vmatpush1.msra.mxu0 0.0
    %1321 = vmatprep.subr.mxu0 0.0
    %1322 = vmatpush1.msra.mxu0 0.0
    %1323 = vmatprep.subr.mxu0 0.0
    %1324 = vmatpush1.msra.mxu0 0.0
    %1325 = vmatprep.subr.mxu0 0.0
    %1326 = vmatpush1.msra.mxu0 0.0
    %1327 = vmatprep.subr.mxu0 0.0
    %1328 = vmatpush1.msra.mxu0 0.0
    %1329 = vmatprep.subr.mxu0 0.0
    %1330 = vmatpush1.msra.mxu0 0.0
    %1331 = vmatprep.subr.mxu0 0.0
    %1332 = vmatpush1.msra.mxu0 0.0
    %1333 = vmatprep.subr.mxu0 0.0
    %1334 = vmatpush1.msra.mxu0 0.0
    %1335 = vmatprep.subr.mxu0 0.0
    %1336 = vmatpush1.msra.mxu0 0.0
    %1337 = vmatprep.subr.mxu0 0.0
    %1338 = vmatpush1.msra.mxu0 0.0
    %1339 = vmatprep.subr.mxu0 0.0
    %1340 = vmatpush1.msra.mxu0 0.0
    %1341 = vmatprep.mubr.f32.mxu0 0.0
    %1342 = vmatmul.mubr.f32.gmra.mrb[0].mxu0 %v1196
    %v1343 = vpop.f32.mrb[0].mxu0
    %v1344 = vadd.f32 0.0, %v1343
    %v1345 = vpop.f32.mrb[0].mxu0
    %v1346 = vadd.f32 0.0, %v1345
    %1347 = vdwg.mxu0
    %v1348 = vadd.f32 %v1202, %v1273
    %v1349 = vadd.f32 %v1203, %v1275
    %v1350 = vadd.f32 %v1204, %v1344
    %v1351 = vadd.f32 %v1205, %v1346
    %v1352 = vxor.u32 %v1348, 2147483648
    %v1353 = vxor.u32 %v1349, 2147483648
    %v1354 = vxor.u32 %v1350, 2147483648
    %v1355 = vmul.f32 %v1352, 1.442695
    %v1356 = vpow.pop %v1355
    %v1357 = vmul.f32 %v1353, 1.442695
    %v1358 = vpow.pop %v1357
    %v1359 = vmul.f32 %v1354, 1.442695
    %v1360 = vpow.pop %v1359
    %v1361 = vadd.f32 %v1356, 1.0
    %v1362 = vadd.f32 %v1358, 1.0
    %v1363 = vadd.f32 %v1360, 1.0
    %v1364 = vrcp.pop %v1361
    %v1365 = vmul.f32 1.0, %v1364
    %v1366 = vrcp.pop %v1362
    %v1367 = vmul.f32 1.0, %v1366
    %v1368 = vrcp.pop %v1363
    %v1369 = vmul.f32 1.0, %v1368
    %v1370 = vtanh.pop %v1351
    %v1371 = vmul.f32 %v1367, %v1194
    %v1372 = vmul.f32 %v1365, %v1370
    %v1373 = vadd.f32 %v1371, %v1372
    %v1374 = vtanh.pop %v1373
    %v1375 = vmul.f32 %v1369, %v1374
    %vm1376 = vcmp.eq.s32.totalorder %v418, 4
    %v1377 = vsel %vm1376, %v1375, %v1198
    %s1378 = smul.u32 5, 4
    %s1379 = smul.addr %s1378, 8
    %s1380 = scalar_lea.vmem [#allocation2], %s1379
    %v1381 = vld [vmem:[%s1380] sm:$0xff]
    %v1382 = vld [vmem:[%s1380 + $0x8] sm:$0xff]
    %v1383 = vld [vmem:[%s1380 + $0x10] sm:$0xff]
    %v1384 = vld [vmem:[%s1380 + $0x18] sm:$0xff]
    %1385 = vmatprep.subr.mxu0 %v427
    %1386 = vmatpush1.msra.mxu0 %v426
    %1387 = vmatprep.subr.mxu0 %v431
    %1388 = vmatpush1.msra.mxu0 %v430
    %1389 = vmatprep.subr.mxu0 %v435
    %1390 = vmatpush1.msra.mxu0 %v434
    %1391 = vmatprep.subr.mxu0 %v439
    %1392 = vmatpush1.msra.mxu0 %v438
    %1393 = vmatprep.subr.mxu0 %v443
    %1394 = vmatpush1.msra.mxu0 %v442
    %1395 = vmatprep.subr.mxu0 %v447
    %1396 = vmatpush1.msra.mxu0 %v446
    %1397 = vmatprep.subr.mxu0 %v451
    %1398 = vmatpush1.msra.mxu0 %v450
    %1399 = vmatprep.subr.mxu0 %v455
    %1400 = vmatpush1.msra.mxu0 %v454
    %1401 = vmatprep.subr.mxu0 %v459
    %1402 = vmatpush1.msra.mxu0 %v458
    %1403 = vmatprep.subr.mxu0 %v463
    %1404 = vmatpush1.msra.mxu0 %v462
    %1405 = vmatprep.subr.mxu0 %v467
    %1406 = vmatpush1.msra.mxu0 %v466
    %1407 = vmatprep.subr.mxu0 %v471
    %1408 = vmatpush1.msra.mxu0 %v470
    %1409 = vmatprep.subr.mxu0 %v475
    %1410 = vmatpush1.msra.mxu0 %v474
    %1411 = vmatprep.subr.mxu0 %v479
    %1412 = vmatpush1.msra.mxu0 %v478
    %1413 = vmatprep.subr.mxu0 %v483
    %1414 = vmatpush1.msra.mxu0 %v482
    %1415 = vmatprep.subr.mxu0 %v487
    %1416 = vmatpush1.msra.mxu0 %v486
    %1417 = vmatprep.subr.mxu0 0.0
    %1418 = vmatpush1.msra.mxu0 0.0
    %1419 = vmatprep.subr.mxu0 0.0
    %1420 = vmatpush1.msra.mxu0 0.0
    %1421 = vmatprep.subr.mxu0 0.0
    %1422 = vmatpush1.msra.mxu0 0.0
    %1423 = vmatprep.subr.mxu0 0.0
    %1424 = vmatpush1.msra.mxu0 0.0
    %1425 = vmatprep.subr.mxu0 0.0
    %1426 = vmatpush1.msra.mxu0 0.0
    %1427 = vmatprep.subr.mxu0 0.0
    %1428 = vmatpush1.msra.mxu0 0.0
    %1429 = vmatprep.subr.mxu0 0.0
    %1430 = vmatpush1.msra.mxu0 0.0
    %1431 = vmatprep.subr.mxu0 0.0
    %1432 = vmatpush1.msra.mxu0 0.0
    %1433 = vmatprep.subr.mxu0 0.0
    %1434 = vmatpush1.msra.mxu0 0.0
    %1435 = vmatprep.subr.mxu0 0.0
    %1436 = vmatpush1.msra.mxu0 0.0
    %1437 = vmatprep.subr.mxu0 0.0
    %1438 = vmatpush1.msra.mxu0 0.0
    %1439 = vmatprep.subr.mxu0 0.0
    %1440 = vmatpush1.msra.mxu0 0.0
    %1441 = vmatprep.subr.mxu0 0.0
    %1442 = vmatpush1.msra.mxu0 0.0
    %1443 = vmatprep.subr.mxu0 0.0
    %1444 = vmatpush1.msra.mxu0 0.0
    %1445 = vmatprep.subr.mxu0 0.0
    %1446 = vmatpush1.msra.mxu0 0.0
    %1447 = vmatprep.subr.mxu0 0.0
    %1448 = vmatpush1.msra.mxu0 0.0
    %1449 = vmatprep.mubr.f32.mxu0 0.0
    %1450 = vmatmul.mubr.f32.gmra.mrb[0].mxu0 %v1375
    %v1451 = vpop.f32.mrb[0].mxu0
    %v1452 = vadd.f32 0.0, %v1451
    %v1453 = vpop.f32.mrb[0].mxu0
    %v1454 = vadd.f32 0.0, %v1453
    %1455 = vdwg.mxu0
    %1456 = vmatprep.subr.mxu0 %v429
    %1457 = vmatpush1.msra.mxu0 %v428
    %1458 = vmatprep.subr.mxu0 %v433
    %1459 = vmatpush1.msra.mxu0 %v432
    %1460 = vmatprep.subr.mxu0 %v437
    %1461 = vmatpush1.msra.mxu0 %v436
    %1462 = vmatprep.subr.mxu0 %v441
    %1463 = vmatpush1.msra.mxu0 %v440
    %1464 = vmatprep.subr.mxu0 %v445
    %1465 = vmatpush1.msra.mxu0 %v444
    %1466 = vmatprep.subr.mxu0 %v449
    %1467 = vmatpush1.msra.mxu0 %v448
    %1468 = vmatprep.subr.mxu0 %v453
    %1469 = vmatpush1.msra.mxu0 %v452
    %1470 = vmatprep.subr.mxu0 %v457
    %1471 = vmatpush1.msra.mxu0 %v456
    %1472 = vmatprep.subr.mxu0 %v461
    %1473 = vmatpush1.msra.mxu0 %v460
    %1474 = vmatprep.subr.mxu0 %v465
    %1475 = vmatpush1.msra.mxu0 %v464
    %1476 = vmatprep.subr.mxu0 %v469
    %1477 = vmatpush1.msra.mxu0 %v468
    %1478 = vmatprep.subr.mxu0 %v473
    %1479 = vmatpush1.msra.mxu0 %v472
    %1480 = vmatprep.subr.mxu0 %v477
    %1481 = vmatpush1.msra.mxu0 %v476
    %1482 = vmatprep.subr.mxu0 %v481
    %1483 = vmatpush1.msra.mxu0 %v480
    %1484 = vmatprep.subr.mxu0 %v485
    %1485 = vmatpush1.msra.mxu0 %v484
    %1486 = vmatprep.subr.mxu0 %v489
    %1487 = vmatpush1.msra.mxu0 %v488
    %1488 = vmatprep.subr.mxu0 0.0
    %1489 = vmatpush1.msra.mxu0 0.0
    %1490 = vmatprep.subr.mxu0 0.0
    %1491 = vmatpush1.msra.mxu0 0.0
    %1492 = vmatprep.subr.mxu0 0.0
    %1493 = vmatpush1.msra.mxu0 0.0
    %1494 = vmatprep.subr.mxu0 0.0
    %1495 = vmatpush1.msra.mxu0 0.0
    %1496 = vmatprep.subr.mxu0 0.0
    %1497 = vmatpush1.msra.mxu0 0.0
    %1498 = vmatprep.subr.mxu0 0.0
    %1499 = vmatpush1.msra.mxu0 0.0
    %1500 = vmatprep.subr.mxu0 0.0
    %1501 = vmatpush1.msra.mxu0 0.0
    %1502 = vmatprep.subr.mxu0 0.0
    %1503 = vmatpush1.msra.mxu0 0.0
    %1504 = vmatprep.subr.mxu0 0.0
    %1505 = vmatpush1.msra.mxu0 0.0
    %1506 = vmatprep.subr.mxu0 0.0
    %1507 = vmatpush1.msra.mxu0 0.0
    %1508 = vmatprep.subr.mxu0 0.0
    %1509 = vmatpush1.msra.mxu0 0.0
    %1510 = vmatprep.subr.mxu0 0.0
    %1511 = vmatpush1.msra.mxu0 0.0
    %1512 = vmatprep.subr.mxu0 0.0
    %1513 = vmatpush1.msra.mxu0 0.0
    %1514 = vmatprep.subr.mxu0 0.0
    %1515 = vmatpush1.msra.mxu0 0.0
    %1516 = vmatprep.subr.mxu0 0.0
    %1517 = vmatpush1.msra.mxu0 0.0
    %1518 = vmatprep.subr.mxu0 0.0
    %1519 = vmatpush1.msra.mxu0 0.0
    %1520 = vmatprep.mubr.f32.mxu0 0.0
    %1521 = vmatmul.mubr.f32.gmra.mrb[0].mxu0 %v1375
    %v1522 = vpop.f32.mrb[0].mxu0
    %v1523 = vadd.f32 0.0, %v1522
    %v1524 = vpop.f32.mrb[0].mxu0
    %v1525 = vadd.f32 0.0, %v1524
    %1526 = vdwg.mxu0
    %v1527 = vadd.f32 %v1381, %v1452
    %v1528 = vadd.f32 %v1382, %v1454
    %v1529 = vadd.f32 %v1383, %v1523
    %v1530 = vadd.f32 %v1384, %v1525
    %v1531 = vxor.u32 %v1527, 2147483648
    %v1532 = vxor.u32 %v1528, 2147483648
    %v1533 = vxor.u32 %v1529, 2147483648
    %v1534 = vmul.f32 %v1531, 1.442695
    %v1535 = vpow.pop %v1534
    %v1536 = vmul.f32 %v1532, 1.442695
    %v1537 = vpow.pop %v1536
    %v1538 = vmul.f32 %v1533, 1.442695
    %v1539 = vpow.pop %v1538
    %v1540 = vadd.f32 %v1535, 1.0
    %v1541 = vadd.f32 %v1537, 1.0
    %v1542 = vadd.f32 %v1539, 1.0
    %v1543 = vrcp.pop %v1540
    %v1544 = vmul.f32 1.0, %v1543
    %v1545 = vrcp.pop %v1541
    %v1546 = vmul.f32 1.0, %v1545
    %v1547 = vrcp.pop %v1542
    %v1548 = vmul.f32 1.0, %v1547
    %v1549 = vtanh.pop %v1530
    %v1550 = vmul.f32 %v1546, %v1373
    %v1551 = vmul.f32 %v1544, %v1549
    %v1552 = vadd.f32 %v1550, %v1551
    %v1553 = vtanh.pop %v1552
    %v1554 = vmul.f32 %v1548, %v1553
    %vm1555 = vcmp.eq.s32.totalorder %v418, 5
    %v1556 = vsel %vm1555, %v1554, %v1377
    %s1557 = smul.u32 6, 4
    %s1558 = smul.addr %s1557, 8
    %s1559 = scalar_lea.vmem [#allocation2], %s1558
    %v1560 = vld [vmem:[%s1559] sm:$0xff]
    %v1561 = vld [vmem:[%s1559 + $0x8] sm:$0xff]
    %v1562 = vld [vmem:[%s1559 + $0x10] sm:$0xff]
    %v1563 = vld [vmem:[%s1559 + $0x18] sm:$0xff]
    %1564 = vmatprep.subr.mxu0 %v427
    %1565 = vmatpush1.msra.mxu0 %v426
    %1566 = vmatprep.subr.mxu0 %v431
    %1567 = vmatpush1.msra.mxu0 %v430
    %1568 = vmatprep.subr.mxu0 %v435
    %1569 = vmatpush1.msra.mxu0 %v434
    %1570 = vmatprep.subr.mxu0 %v439
    %1571 = vmatpush1.msra.mxu0 %v438
    %1572 = vmatprep.subr.mxu0 %v443
    %1573 = vmatpush1.msra.mxu0 %v442
    %1574 = vmatprep.subr.mxu0 %v447
    %1575 = vmatpush1.msra.mxu0 %v446
    %1576 = vmatprep.subr.mxu0 %v451
    %1577 = vmatpush1.msra.mxu0 %v450
    %1578 = vmatprep.subr.mxu0 %v455
    %1579 = vmatpush1.msra.mxu0 %v454
    %1580 = vmatprep.subr.mxu0 %v459
    %1581 = vmatpush1.msra.mxu0 %v458
    %1582 = vmatprep.subr.mxu0 %v463
    %1583 = vmatpush1.msra.mxu0 %v462
    %1584 = vmatprep.subr.mxu0 %v467
    %1585 = vmatpush1.msra.mxu0 %v466
    %1586 = vmatprep.subr.mxu0 %v471
    %1587 = vmatpush1.msra.mxu0 %v470
    %1588 = vmatprep.subr.mxu0 %v475
    %1589 = vmatpush1.msra.mxu0 %v474
    %1590 = vmatprep.subr.mxu0 %v479
    %1591 = vmatpush1.msra.mxu0 %v478
    %1592 = vmatprep.subr.mxu0 %v483
    %1593 = vmatpush1.msra.mxu0 %v482
    %1594 = vmatprep.subr.mxu0 %v487
    %1595 = vmatpush1.msra.mxu0 %v486
    %1596 = vmatprep.subr.mxu0 0.0
    %1597 = vmatpush1.msra.mxu0 0.0
    %1598 = vmatprep.subr.mxu0 0.0
    %1599 = vmatpush1.msra.mxu0 0.0
    %1600 = vmatprep.subr.mxu0 0.0
    %1601 = vmatpush1.msra.mxu0 0.0
    %1602 = vmatprep.subr.mxu0 0.0
    %1603 = vmatpush1.msra.mxu0 0.0
    %1604 = vmatprep.subr.mxu0 0.0
    %1605 = vmatpush1.msra.mxu0 0.0
    %1606 = vmatprep.subr.mxu0 0.0
    %1607 = vmatpush1.msra.mxu0 0.0
    %1608 = vmatprep.subr.mxu0 0.0
    %1609 = vmatpush1.msra.mxu0 0.0
    %1610 = vmatprep.subr.mxu0 0.0
    %1611 = vmatpush1.msra.mxu0 0.0
    %1612 = vmatprep.subr.mxu0 0.0
    %1613 = vmatpush1.msra.mxu0 0.0
    %1614 = vmatprep.subr.mxu0 0.0
    %1615 = vmatpush1.msra.mxu0 0.0
    %1616 = vmatprep.subr.mxu0 0.0
    %1617 = vmatpush1.msra.mxu0 0.0
    %1618 = vmatprep.subr.mxu0 0.0
    %1619 = vmatpush1.msra.mxu0 0.0
    %1620 = vmatprep.subr.mxu0 0.0
    %1621 = vmatpush1.msra.mxu0 0.0
    %1622 = vmatprep.subr.mxu0 0.0
    %1623 = vmatpush1.msra.mxu0 0.0
    %1624 = vmatprep.subr.mxu0 0.0
    %1625 = vmatpush1.msra.mxu0 0.0
    %1626 = vmatprep.subr.mxu0 0.0
    %1627 = vmatpush1.msra.mxu0 0.0
    %1628 = vmatprep.mubr.f32.mxu0 0.0
    %1629 = vmatmul.mubr.f32.gmra.mrb[0].mxu0 %v1554
    %v1630 = vpop.f32.mrb[0].mxu0
    %v1631 = vadd.f32 0.0, %v1630
    %v1632 = vpop.f32.mrb[0].mxu0
    %v1633 = vadd.f32 0.0, %v1632
    %1634 = vdwg.mxu0
    %1635 = vmatprep.subr.mxu0 %v429
    %1636 = vmatpush1.msra.mxu0 %v428
    %1637 = vmatprep.subr.mxu0 %v433
    %1638 = vmatpush1.msra.mxu0 %v432
    %1639 = vmatprep.subr.mxu0 %v437
    %1640 = vmatpush1.msra.mxu0 %v436
    %1641 = vmatprep.subr.mxu0 %v441
    %1642 = vmatpush1.msra.mxu0 %v440
    %1643 = vmatprep.subr.mxu0 %v445
    %1644 = vmatpush1.msra.mxu0 %v444
    %1645 = vmatprep.subr.mxu0 %v449
    %1646 = vmatpush1.msra.mxu0 %v448
    %1647 = vmatprep.subr.mxu0 %v453
    %1648 = vmatpush1.msra.mxu0 %v452
    %1649 = vmatprep.subr.mxu0 %v457
    %1650 = vmatpush1.msra.mxu0 %v456
    %1651 = vmatprep.subr.mxu0 %v461
    %1652 = vmatpush1.msra.mxu0 %v460
    %1653 = vmatprep.subr.mxu0 %v465
    %1654 = vmatpush1.msra.mxu0 %v464
    %1655 = vmatprep.subr.mxu0 %v469
    %1656 = vmatpush1.msra.mxu0 %v468
    %1657 = vmatprep.subr.mxu0 %v473
    %1658 = vmatpush1.msra.mxu0 %v472
    %1659 = vmatprep.subr.mxu0 %v477
    %1660 = vmatpush1.msra.mxu0 %v476
    %1661 = vmatprep.subr.mxu0 %v481
    %1662 = vmatpush1.msra.mxu0 %v480
    %1663 = vmatprep.subr.mxu0 %v485
    %1664 = vmatpush1.msra.mxu0 %v484
    %1665 = vmatprep.subr.mxu0 %v489
    %1666 = vmatpush1.msra.mxu0 %v488
    %1667 = vmatprep.subr.mxu0 0.0
    %1668 = vmatpush1.msra.mxu0 0.0
    %1669 = vmatprep.subr.mxu0 0.0
    %1670 = vmatpush1.msra.mxu0 0.0
    %1671 = vmatprep.subr.mxu0 0.0
    %1672 = vmatpush1.msra.mxu0 0.0
    %1673 = vmatprep.subr.mxu0 0.0
    %1674 = vmatpush1.msra.mxu0 0.0
    %1675 = vmatprep.subr.mxu0 0.0
    %1676 = vmatpush1.msra.mxu0 0.0
    %1677 = vmatprep.subr.mxu0 0.0
    %1678 = vmatpush1.msra.mxu0 0.0
    %1679 = vmatprep.subr.mxu0 0.0
    %1680 = vmatpush1.msra.mxu0 0.0
    %1681 = vmatprep.subr.mxu0 0.0
    %1682 = vmatpush1.msra.mxu0 0.0
    %1683 = vmatprep.subr.mxu0 0.0
    %1684 = vmatpush1.msra.mxu0 0.0
    %1685 = vmatprep.subr.mxu0 0.0
    %1686 = vmatpush1.msra.mxu0 0.0
    %1687 = vmatprep.subr.mxu0 0.0
    %1688 = vmatpush1.msra.mxu0 0.0
    %1689 = vmatprep.subr.mxu0 0.0
    %1690 = vmatpush1.msra.mxu0 0.0
    %1691 = vmatprep.subr.mxu0 0.0
    %1692 = vmatpush1.msra.mxu0 0.0
    %1693 = vmatprep.subr.mxu0 0.0
    %1694 = vmatpush1.msra.mxu0 0.0
    %1695 = vmatprep.subr.mxu0 0.0
    %1696 = vmatpush1.msra.mxu0 0.0
    %1697 = vmatprep.subr.mxu0 0.0
    %1698 = vmatpush1.msra.mxu0 0.0
    %1699 = vmatprep.mubr.f32.mxu0 0.0
    %1700 = vmatmul.mubr.f32.gmra.mrb[0].mxu0 %v1554
    %v1701 = vpop.f32.mrb[0].mxu0
    %v1702 = vadd.f32 0.0, %v1701
    %v1703 = vpop.f32.mrb[0].mxu0
    %v1704 = vadd.f32 0.0, %v1703
    %1705 = vdwg.mxu0
    %v1706 = vadd.f32 %v1560, %v1631
    %v1707 = vadd.f32 %v1561, %v1633
    %v1708 = vadd.f32 %v1562, %v1702
    %v1709 = vadd.f32 %v1563, %v1704
    %v1710 = vxor.u32 %v1706, 2147483648
    %v1711 = vxor.u32 %v1707, 2147483648
    %v1712 = vxor.u32 %v1708, 2147483648
    %v1713 = vmul.f32 %v1710, 1.442695
    %v1714 = vpow.pop %v1713
    %v1715 = vmul.f32 %v1711, 1.442695
    %v1716 = vpow.pop %v1715
    %v1717 = vmul.f32 %v1712, 1.442695
    %v1718 = vpow.pop %v1717
    %v1719 = vadd.f32 %v1714, 1.0
    %v1720 = vadd.f32 %v1716, 1.0
    %v1721 = vadd.f32 %v1718, 1.0
    %v1722 = vrcp.pop %v1719
    %v1723 = vmul.f32 1.0, %v1722
    %v1724 = vrcp.pop %v1720
    %v1725 = vmul.f32 1.0, %v1724
    %v1726 = vrcp.pop %v1721
    %v1727 = vmul.f32 1.0, %v1726
    %v1728 = vtanh.pop %v1709
    %v1729 = vmul.f32 %v1725, %v1552
    %v1730 = vmul.f32 %v1723, %v1728
    %v1731 = vadd.f32 %v1729, %v1730
    %v1732 = vtanh.pop %v1731
    %v1733 = vmul.f32 %v1727, %v1732
    %vm1734 = vcmp.eq.s32.totalorder %v418, 6
    %v1735 = vsel %vm1734, %v1733, %v1556
    %s1736 = smul.u32 7, 4
    %s1737 = smul.addr %s1736, 8
    %s1738 = scalar_lea.vmem [#allocation2], %s1737
    %v1739 = vld [vmem:[%s1738] sm:$0xff]
    %v1740 = vld [vmem:[%s1738 + $0x8] sm:$0xff]
    %v1741 = vld [vmem:[%s1738 + $0x10] sm:$0xff]
    %v1742 = vld [vmem:[%s1738 + $0x18] sm:$0xff]
    %1743 = vmatprep.subr.mxu0 %v427
    %1744 = vmatpush1.msra.mxu0 %v426
    %1745 = vmatprep.subr.mxu0 %v431
    %1746 = vmatpush1.msra.mxu0 %v430
    %1747 = vmatprep.subr.mxu0 %v435
    %1748 = vmatpush1.msra.mxu0 %v434
    %1749 = vmatprep.subr.mxu0 %v439
    %1750 = vmatpush1.msra.mxu0 %v438
    %1751 = vmatprep.subr.mxu0 %v443
    %1752 = vmatpush1.msra.mxu0 %v442
    %1753 = vmatprep.subr.mxu0 %v447
    %1754 = vmatpush1.msra.mxu0 %v446
    %1755 = vmatprep.subr.mxu0 %v451
    %1756 = vmatpush1.msra.mxu0 %v450
    %1757 = vmatprep.subr.mxu0 %v455
    %1758 = vmatpush1.msra.mxu0 %v454
    %1759 = vmatprep.subr.mxu0 %v459
    %1760 = vmatpush1.msra.mxu0 %v458
    %1761 = vmatprep.subr.mxu0 %v463
    %1762 = vmatpush1.msra.mxu0 %v462
    %1763 = vmatprep.subr.mxu0 %v467
    %1764 = vmatpush1.msra.mxu0 %v466
    %1765 = vmatprep.subr.mxu0 %v471
    %1766 = vmatpush1.msra.mxu0 %v470
    %1767 = vmatprep.subr.mxu0 %v475
    %1768 = vmatpush1.msra.mxu0 %v474
    %1769 = vmatprep.subr.mxu0 %v479
    %1770 = vmatpush1.msra.mxu0 %v478
    %1771 = vmatprep.subr.mxu0 %v483
    %1772 = vmatpush1.msra.mxu0 %v482
    %1773 = vmatprep.subr.mxu0 %v487
    %1774 = vmatpush1.msra.mxu0 %v486
    %1775 = vmatprep.subr.mxu0 0.0
    %1776 = vmatpush1.msra.mxu0 0.0
    %1777 = vmatprep.subr.mxu0 0.0
    %1778 = vmatpush1.msra.mxu0 0.0
    %1779 = vmatprep.subr.mxu0 0.0
    %1780 = vmatpush1.msra.mxu0 0.0
    %1781 = vmatprep.subr.mxu0 0.0
    %1782 = vmatpush1.msra.mxu0 0.0
    %1783 = vmatprep.subr.mxu0 0.0
    %1784 = vmatpush1.msra.mxu0 0.0
    %1785 = vmatprep.subr.mxu0 0.0
    %1786 = vmatpush1.msra.mxu0 0.0
    %1787 = vmatprep.subr.mxu0 0.0
    %1788 = vmatpush1.msra.mxu0 0.0
    %1789 = vmatprep.subr.mxu0 0.0
    %1790 = vmatpush1.msra.mxu0 0.0
    %1791 = vmatprep.subr.mxu0 0.0
    %1792 = vmatpush1.msra.mxu0 0.0
    %1793 = vmatprep.subr.mxu0 0.0
    %1794 = vmatpush1.msra.mxu0 0.0
    %1795 = vmatprep.subr.mxu0 0.0
    %1796 = vmatpush1.msra.mxu0 0.0
    %1797 = vmatprep.subr.mxu0 0.0
    %1798 = vmatpush1.msra.mxu0 0.0
    %1799 = vmatprep.subr.mxu0 0.0
    %1800 = vmatpush1.msra.mxu0 0.0
    %1801 = vmatprep.subr.mxu0 0.0
    %1802 = vmatpush1.msra.mxu0 0.0
    %1803 = vmatprep.subr.mxu0 0.0
    %1804 = vmatpush1.msra.mxu0 0.0
    %1805 = vmatprep.subr.mxu0 0.0
    %1806 = vmatpush1.msra.mxu0 0.0
    %1807 = vmatprep.mubr.f32.mxu0 0.0
    %1808 = vmatmul.mubr.f32.gmra.mrb[0].mxu0 %v1733
    %v1809 = vpop.f32.mrb[0].mxu0
    %v1810 = vadd.f32 0.0, %v1809
    %v1811 = vpop.f32.mrb[0].mxu0
    %v1812 = vadd.f32 0.0, %v1811
    %1813 = vdwg.mxu0
    %1814 = vmatprep.subr.mxu0 %v429
    %1815 = vmatpush1.msra.mxu0 %v428
    %1816 = vmatprep.subr.mxu0 %v433
    %1817 = vmatpush1.msra.mxu0 %v432
    %1818 = vmatprep.subr.mxu0 %v437
    %1819 = vmatpush1.msra.mxu0 %v436
    %1820 = vmatprep.subr.mxu0 %v441
    %1821 = vmatpush1.msra.mxu0 %v440
    %1822 = vmatprep.subr.mxu0 %v445
    %1823 = vmatpush1.msra.mxu0 %v444
    %1824 = vmatprep.subr.mxu0 %v449
    %1825 = vmatpush1.msra.mxu0 %v448
    %1826 = vmatprep.subr.mxu0 %v453
    %1827 = vmatpush1.msra.mxu0 %v452
    %1828 = vmatprep.subr.mxu0 %v457
    %1829 = vmatpush1.msra.mxu0 %v456
    %1830 = vmatprep.subr.mxu0 %v461
    %1831 = vmatpush1.msra.mxu0 %v460
    %1832 = vmatprep.subr.mxu0 %v465
    %1833 = vmatpush1.msra.mxu0 %v464
    %1834 = vmatprep.subr.mxu0 %v469
    %1835 = vmatpush1.msra.mxu0 %v468
    %1836 = vmatprep.subr.mxu0 %v473
    %1837 = vmatpush1.msra.mxu0 %v472
    %1838 = vmatprep.subr.mxu0 %v477
    %1839 = vmatpush1.msra.mxu0 %v476
    %1840 = vmatprep.subr.mxu0 %v481
    %1841 = vmatpush1.msra.mxu0 %v480
    %1842 = vmatprep.subr.mxu0 %v485
    %1843 = vmatpush1.msra.mxu0 %v484
    %1844 = vmatprep.subr.mxu0 %v489
    %1845 = vmatpush1.msra.mxu0 %v488
    %1846 = vmatprep.subr.mxu0 0.0
    %1847 = vmatpush1.msra.mxu0 0.0
    %1848 = vmatprep.subr.mxu0 0.0
    %1849 = vmatpush1.msra.mxu0 0.0
    %1850 = vmatprep.subr.mxu0 0.0
    %1851 = vmatpush1.msra.mxu0 0.0
    %1852 = vmatprep.subr.mxu0 0.0
    %1853 = vmatpush1.msra.mxu0 0.0
    %1854 = vmatprep.subr.mxu0 0.0
    %1855 = vmatpush1.msra.mxu0 0.0
    %1856 = vmatprep.subr.mxu0 0.0
    %1857 = vmatpush1.msra.mxu0 0.0
    %1858 = vmatprep.subr.mxu0 0.0
    %1859 = vmatpush1.msra.mxu0 0.0
    %1860 = vmatprep.subr.mxu0 0.0
    %1861 = vmatpush1.msra.mxu0 0.0
    %1862 = vmatprep.subr.mxu0 0.0
    %1863 = vmatpush1.msra.mxu0 0.0
    %1864 = vmatprep.subr.mxu0 0.0
    %1865 = vmatpush1.msra.mxu0 0.0
    %1866 = vmatprep.subr.mxu0 0.0
    %1867 = vmatpush1.msra.mxu0 0.0
    %1868 = vmatprep.subr.mxu0 0.0
    %1869 = vmatpush1.msra.mxu0 0.0
    %1870 = vmatprep.subr.mxu0 0.0
    %1871 = vmatpush1.msra.mxu0 0.0
    %1872 = vmatprep.subr.mxu0 0.0
    %1873 = vmatpush1.msra.mxu0 0.0
    %1874 = vmatprep.subr.mxu0 0.0
    %1875 = vmatpush1.msra.mxu0 0.0
    %1876 = vmatprep.subr.mxu0 0.0
    %1877 = vmatpush1.msra.mxu0 0.0
    %1878 = vmatprep.mubr.f32.mxu0 0.0
    %1879 = vmatmul.mubr.f32.gmra.mrb[0].mxu0 %v1733
    %v1880 = vpop.f32.mrb[0].mxu0
    %v1881 = vadd.f32 0.0, %v1880
    %v1882 = vpop.f32.mrb[0].mxu0
    %v1883 = vadd.f32 0.0, %v1882
    %1884 = vdwg.mxu0
    %v1885 = vadd.f32 %v1739, %v1810
    %v1886 = vadd.f32 %v1740, %v1812
    %v1887 = vadd.f32 %v1741, %v1881
    %v1888 = vadd.f32 %v1742, %v1883
    %v1889 = vxor.u32 %v1885, 2147483648
    %v1890 = vxor.u32 %v1886, 2147483648
    %v1891 = vxor.u32 %v1887, 2147483648
    %v1892 = vmul.f32 %v1889, 1.442695
    %v1893 = vpow.pop %v1892
    %v1894 = vmul.f32 %v1890, 1.442695
    %v1895 = vpow.pop %v1894
    %v1896 = vmul.f32 %v1891, 1.442695
    %v1897 = vpow.pop %v1896
    %v1898 = vadd.f32 %v1893, 1.0
    %v1899 = vadd.f32 %v1895, 1.0
    %v1900 = vadd.f32 %v1897, 1.0
    %v1901 = vrcp.pop %v1898
    %v1902 = vmul.f32 1.0, %v1901
    %v1903 = vrcp.pop %v1899
    %v1904 = vmul.f32 1.0, %v1903
    %v1905 = vrcp.pop %v1900
    %v1906 = vmul.f32 1.0, %v1905
    %v1907 = vtanh.pop %v1888
    %v1908 = vmul.f32 %v1904, %v1731
    %v1909 = vmul.f32 %v1902, %v1907
    %v1910 = vadd.f32 %v1908, %v1909
    %v1911 = vtanh.pop %v1910
    %v1912 = vmul.f32 %v1906, %v1911
    %vm1913 = vcmp.eq.s32.totalorder %v418, 7
    %v1914 = vsel %vm1913, %v1912, %v1735
    %1915 = vst [vmem:[#allocation9] sm:$0xff] %v1914
    // Predicated region
    $region34: #{tpu_custom_call.1} parent=1 // pred_check
      _
    $region35: #{tpu_custom_call.1} parent=1 // pred_check_branch
      %1917 = sbr.rel (0) target = $region37
    $region36: #{tpu_custom_call.1} parent=1 // pred_region
      %s1919 = ssub.s32 128, 128
      %1920 = vsyncadd [#allocation5], %s1919
      %s1922 = sshll.u32 [#allocation9], 4
      %s1923 = int_to_ptr.vmem [resolvable:$true] %s1922
      %1925 = dma.vmem_to_hbm [thread:$0]  %s1923, 128, %s5, [#allocation5]
    $region37: #{tpu_custom_call.1} parent=1 // pred_fallthru
      _
    // Predicated region
    $region38: #{tpu_custom_call.1} parent=1 // pred_check
      _
    $region39: #{tpu_custom_call.1} parent=1 // pred_check_branch
      %1927 = sbr.rel (0) target = $region41
    $region40: #{tpu_custom_call.1} parent=1 // pred_region
      %1928 = dma.done [#allocation5], 128
    $region41: #{tpu_custom_call.1} parent=1 // pred_fallthru
      _
    %1929 = vsyncpa [#allocation4], 1
    %1930 = vsyncpa [#allocation7], 1
    %1931 = vsyncpa [#allocation5], 1

</llo_original>
